<compile_context>
chip_gen: v7x
topology: tpu7x:2x2x1
jax: 0.10.0
libtpu: 0.0.40
codegen_flags: <defaults>
</compile_context>

<pallas_src>
import jax
import jax.numpy as jnp
from jax.experimental import pallas as pl
from jax.experimental.pallas import tpu as pltpu


def gru_inter_kernel(x_ref, hmask_ref, wmask_ref, wi3_ref, wh3_ref,
                     bi3_ref, bhn_ref, bt_ref, out_ref):
    """Fused GRU recurrence + masked, time-weighted rnn_out reduction.

    x_ref:     (T*B, E)  time-major rows (row t*B + b == seq[t, b])
    hmask_ref: (T, B, 1) 1.0 while t < lengths[b]  (pack_padded_sequence mask)
    wmask_ref: (T, B, 1) w_time[t] * hmask[t, b]   (inter-layer weight folded in)
    wi3_ref:   (3, E, H) per-gate input weights, transposed, order [r, z, n]
    wh3_ref:   (3, H, H) per-gate hidden weights, transposed
    bi3_ref:   (3, 1, H) [b_ir+b_hr, b_iz+b_hz, b_in]  (r/z biases pre-merged)
    bhn_ref:   (1, H)    b_hn (must stay separate: it sits inside r * (...))
    bt_ref:    (1, 1)    inter-layer bias
    out_ref:   (B, H)    tanh(acc + b_time)  ==  tanh(V)^T, V = inter pre-view
    """
    T = hmask_ref.shape[0]
    B = hmask_ref.shape[1]
    H = wh3_ref.shape[2]

    x = x_ref[...]                                           # (T*B, E)

    # ---- Hoisted input projection (review #2): one MXU matmul per gate over
    # all T*B rows, removing an MXU op + add from every serial step.
    xr = jnp.dot(x, wi3_ref[0], preferred_element_type=jnp.float32) + bi3_ref[0]
    xz = jnp.dot(x, wi3_ref[1], preferred_element_type=jnp.float32) + bi3_ref[1]
    xn = jnp.dot(x, wi3_ref[2], preferred_element_type=jnp.float32) + bi3_ref[2]

    whr = wh3_ref[0]
    whz = wh3_ref[1]
    whn = wh3_ref[2]
    bhn = bhn_ref[...]

    def sigmoid(v):
        return 1.0 / (1.0 + jnp.exp(-v))

    h = jnp.zeros((B, H), jnp.float32)      # h_0 = 0 (Model1.init_hidden)
    acc = jnp.zeros((B, H), jnp.float32)    # acc[b,h] = sum_t w_time[t]*rnn_out[t,b,h]

    # ---- Recurrence, fully unrolled (review #1): T is a compile-time constant
    # so this static loop is the unrolled equivalent of
    # lax.fori_loop(0, T, ..., unroll=True).  h / acc stay in vregs; no grid
    # overhead, no per-step VMEM round-trip of the hidden state.
    for t in range(T):
        lo = t * B                          # sublane-aligned row slice (B == 8)
        gr = jnp.dot(h, whr, preferred_element_type=jnp.float32)
        gz = jnp.dot(h, whz, preferred_element_type=jnp.float32)
        gn = jnp.dot(h, whn, preferred_element_type=jnp.float32) + bhn
        r = sigmoid(xr[lo:lo + B, :] + gr)
        z = sigmoid(xz[lo:lo + B, :] + gz)
        n = jnp.tanh(xn[lo:lo + B, :] + r * gn)
        h_new = n + z * (h - n)             # == (1 - z) * n + z * h

        m = hmask_ref[t]                    # (B, 1)
        wv = wmask_ref[t]                   # (B, 1)
        h = h + m * (h_new - h)             # packed-seq: freeze finished rows
        acc = acc + wv * h_new              # rnn_out is zero past each length

    # The inter-layer bias add and tanh commute with the flat .view()
    # permutation, so they are fused here (EUP slot, essentially free).
    out_ref[...] = jnp.tanh(acc + bt_ref[...])


def model1_forward(seq, lengths, params):
    """Inference forward of Model1.

    seq:     (T, B, E) float32, time-major (nn.GRU / pack_padded_sequence layout)
    lengths: (B,) int, sorted descending, max(lengths) == T
    """
    T, B, E = seq.shape
    H = params["w_hh"].shape[1]
    f32 = jnp.float32

    w_ih = params["w_ih"].astype(f32)       # (3H, E), gate order [r | z | n]
    w_hh = params["w_hh"].astype(f32)       # (3H, H)
    b_ih = params["b_ih"].astype(f32)       # (3H,)
    b_hh = params["b_hh"].astype(f32)       # (3H,)

    # Glue: per-gate, pre-transposed weights so the kernel runs plain x @ W.
    wi3 = jnp.stack([w_ih[g * H:(g + 1) * H, :].T for g in range(3)])   # (3,E,H)
    wh3 = jnp.stack([w_hh[g * H:(g + 1) * H, :].T for g in range(3)])   # (3,H,H)
    # r/z input+hidden biases merge exactly; the n-gate hidden bias cannot
    # (it sits inside r * (W_hn h + b_hn)).
    bi3 = jnp.stack([
        (b_ih[0:H] + b_hh[0:H]).reshape(1, H),
        (b_ih[H:2 * H] + b_hh[H:2 * H]).reshape(1, H),
        b_ih[2 * H:3 * H].reshape(1, H),
    ])                                                                   # (3,1,H)
    bhn = b_hh[2 * H:3 * H].reshape(1, H)                                # (1,H)
    bt = params["b_time"].astype(f32).reshape(1, 1)                      # (1,1)

    # pack_padded_sequence mask, with the inter-layer time weights folded in.
    t_idx = jnp.arange(T, dtype=jnp.int32).reshape(T, 1)
    valid = (t_idx < lengths.astype(jnp.int32).reshape(1, B)).astype(f32)  # (T,B)
    hmask = valid.reshape(T, B, 1)
    wmask = (params["w_time"].astype(f32).reshape(T, 1) * valid).reshape(T, B, 1)

    x2d = seq.astype(f32).reshape(T * B, E)   # row t*B + b == seq[t, b]

    u = pl.pallas_call(
        gru_inter_kernel,
        out_shape=jax.ShapeDtypeStruct((B, H), f32),
        in_specs=[pl.BlockSpec(memory_space=pltpu.MemorySpace.VMEM)] * 8,
        out_specs=pl.BlockSpec(memory_space=pltpu.MemorySpace.VMEM),
    )(x2d, hmask, wmask, wi3, wh3, bi3, bhn, bt)

    # u == tanh(V)^T with V[h, b] = sum_t rnn_out[t, b, h] * w_time[t] + b_time.
    # PyTorch then does V.view(B, H): a flat row-major reinterpretation that
    # mixes batch and hidden indices.  That pure permutation plus the tiny
    # (B,H)x(H,O) head is layout plumbing left to XLA in the wrapper.
    inter = u.T.reshape(B, H)
    logits = inter @ params["w_out"].astype(f32).T + params["b_out"].astype(f32)
    return jax.nn.log_softmax(logits, axis=-1)


def ref_forward(seq, lengths, params):
    """Pure-JAX reference mirroring Model1.forward (train=False) exactly."""
    T, B, E = seq.shape
    H = params["w_hh"].shape[1]
    w_ih, w_hh = params["w_ih"], params["w_hh"]
    b_ih, b_hh = params["b_ih"], params["b_hh"]
    h = jnp.zeros((B, H), jnp.float32)
    rnn_out = []
    for t in range(T):
        gi = seq[t] @ w_ih.T + b_ih
        gh = h @ w_hh.T + b_hh
        r = jax.nn.sigmoid(gi[:, :H] + gh[:, :H])
        z = jax.nn.sigmoid(gi[:, H:2 * H] + gh[:, H:2 * H])
        n = jnp.tanh(gi[:, 2 * H:] + r * gh[:, 2 * H:])
        h_new = (1.0 - z) * n + z * h
        valid = (t < lengths)[:, None]
        h = jnp.where(valid, h_new, h)
        rnn_out.append(jnp.where(valid, h_new, 0.0))      # pad_packed zero-fill
    rnn_out = jnp.stack(rnn_out)                          # (T, B, H)
    # inter_layer(rnn_out.transpose(0, 2)) -> (H, B, 1), then .view(B, H)
    V = jnp.einsum("tbh,t->hb", rnn_out, params["w_time"]) + params["b_time"]
    inter = jnp.tanh(V.reshape(B, H))
    logits = inter @ params["w_out"].T + params["b_out"]
    return jax.nn.log_softmax(logits, axis=-1)


if __name__ == "__main__":
    # Model1(embedding_dim=32, n_hidden=32, n_out=16, drop_p=0.1), T=8, B=8.
    T, B, E, H, O = 8, 8, 32, 32, 16

    key = jax.random.PRNGKey(0)
    ks = jax.random.split(key, 10)
    bh = 1.0 / (H ** 0.5)
    bt_ = 1.0 / (T ** 0.5)

    def u(k, shape, bnd):
        return jax.random.uniform(k, shape, jnp.float32, -bnd, bnd)

    params = {
        "w_ih":   u(ks[0], (3 * H, E), bh),   # GRU weight_ih_l0 (r|z|n stacked)
        "w_hh":   u(ks[1], (3 * H, H), bh),   # GRU weight_hh_l0
        "b_ih":   u(ks[2], (3 * H,), bh),
        "b_hh":   u(ks[3], (3 * H,), bh),
        "w_out":  u(ks[4], (O, H), bh),       # self.out = Linear(H, O)
        "b_out":  u(ks[5], (O,), bh),
        "w_time": u(ks[6], (T,), bt_),        # inter_layer = Linear(T, 1) weight
        "b_time": u(ks[7], (), bt_),          # inter_layer bias
    }

    seq = jax.random.normal(ks[8], (T, B, E), jnp.float32)
    # lengths sorted descending, max == T (pack_padded_sequence requirement)
    lengths = jnp.array([8, 8, 7, 6, 5, 4, 3, 2], dtype=jnp.int32)

    out = model1_forward(seq, lengths, params)
    out = jax.block_until_ready(out)

    ref = ref_forward(seq, lengths, params)
    assert out.shape == (B, O)
    assert jnp.allclose(out, ref, atol=1e-4, rtol=1e-4), (
        "mismatch vs reference: max |diff| = %e" % float(jnp.max(jnp.abs(out - ref))))

    print("KERNEL_OK")
</pallas_src>

<mosaic_0001>
module attributes {stable_mosaic.version = 11 : i64} {
  func.func @gru_inter_kernel(%arg0: memref<64x32xf32, #tpu.memory_space<vmem>>, %arg1: memref<8x8x1xf32, #tpu.memory_space<vmem>>, %arg2: memref<8x8x1xf32, #tpu.memory_space<vmem>>, %arg3: memref<3x32x32xf32, #tpu.memory_space<vmem>>, %arg4: memref<3x32x32xf32, #tpu.memory_space<vmem>>, %arg5: memref<3x1x32xf32, #tpu.memory_space<vmem>>, %arg6: memref<1x32xf32, #tpu.memory_space<vmem>>, %arg7: memref<1x1xf32, #tpu.memory_space<vmem>>, %arg8: memref<8x32xf32, #tpu.memory_space<vmem>>) attributes {dimension_semantics = [], scalar_prefetch = 0 : i64, scratch_operands = 0 : i64, tpu.core_type = #tpu.core_type<tc>} {
    %c0 = arith.constant 0 : index
    %c0_0 = arith.constant 0 : index
    %0 = vector.load %arg0[%c0, %c0_0] : memref<64x32xf32, #tpu.memory_space<vmem>>, vector<64x32xf32>
    %c0_1 = arith.constant 0 : index
    %c0_2 = arith.constant 0 : index
    %c0_3 = arith.constant 0 : index
    %1 = vector.load %arg3[%c0_1, %c0_2, %c0_3] : memref<3x32x32xf32, #tpu.memory_space<vmem>>, vector<1x32x32xf32>
    %2 = vector.shape_cast %1 : vector<1x32x32xf32> to vector<32x32xf32>
    %cst = arith.constant dense<0.000000e+00> : vector<64x32xf32>
    %3 = tpu.matmul %0, %2, %cst {dimension_numbers = #tpu.dot_dimension_numbers<[1], [0], [0], [1], [0, 0, 1, 1], [], []>} : vector<64x32xf32>, vector<32x32xf32>, vector<64x32xf32> -> vector<64x32xf32>
    %c0_4 = arith.constant 0 : index
    %c0_5 = arith.constant 0 : index
    %c0_6 = arith.constant 0 : index
    %4 = vector.load %arg5[%c0_4, %c0_5, %c0_6] : memref<3x1x32xf32, #tpu.memory_space<vmem>>, vector<1x1x32xf32>
    %5 = vector.shape_cast %4 : vector<1x1x32xf32> to vector<1x32xf32>
    %6 = vector.broadcast %5 : vector<1x32xf32> to vector<64x32xf32>
    %7 = arith.addf %3, %6 : vector<64x32xf32>
    %c1 = arith.constant 1 : index
    %c0_7 = arith.constant 0 : index
    %c0_8 = arith.constant 0 : index
    %8 = vector.load %arg3[%c1, %c0_7, %c0_8] : memref<3x32x32xf32, #tpu.memory_space<vmem>>, vector<1x32x32xf32>
    %9 = vector.shape_cast %8 : vector<1x32x32xf32> to vector<32x32xf32>
    %cst_9 = arith.constant dense<0.000000e+00> : vector<64x32xf32>
    %10 = tpu.matmul %0, %9, %cst_9 {dimension_numbers = #tpu.dot_dimension_numbers<[1], [0], [0], [1], [0, 0, 1, 1], [], []>} : vector<64x32xf32>, vector<32x32xf32>, vector<64x32xf32> -> vector<64x32xf32>
    %c1_10 = arith.constant 1 : index
    %c0_11 = arith.constant 0 : index
    %c0_12 = arith.constant 0 : index
    %11 = vector.load %arg5[%c1_10, %c0_11, %c0_12] : memref<3x1x32xf32, #tpu.memory_space<vmem>>, vector<1x1x32xf32>
    %12 = vector.shape_cast %11 : vector<1x1x32xf32> to vector<1x32xf32>
    %13 = vector.broadcast %12 : vector<1x32xf32> to vector<64x32xf32>
    %14 = arith.addf %10, %13 : vector<64x32xf32>
    %c2 = arith.constant 2 : index
    %c0_13 = arith.constant 0 : index
    %c0_14 = arith.constant 0 : index
    %15 = vector.load %arg3[%c2, %c0_13, %c0_14] : memref<3x32x32xf32, #tpu.memory_space<vmem>>, vector<1x32x32xf32>
    %16 = vector.shape_cast %15 : vector<1x32x32xf32> to vector<32x32xf32>
    %cst_15 = arith.constant dense<0.000000e+00> : vector<64x32xf32>
    %17 = tpu.matmul %0, %16, %cst_15 {dimension_numbers = #tpu.dot_dimension_numbers<[1], [0], [0], [1], [0, 0, 1, 1], [], []>} : vector<64x32xf32>, vector<32x32xf32>, vector<64x32xf32> -> vector<64x32xf32>
    %c2_16 = arith.constant 2 : index
    %c0_17 = arith.constant 0 : index
    %c0_18 = arith.constant 0 : index
    %18 = vector.load %arg5[%c2_16, %c0_17, %c0_18] : memref<3x1x32xf32, #tpu.memory_space<vmem>>, vector<1x1x32xf32>
    %19 = vector.shape_cast %18 : vector<1x1x32xf32> to vector<1x32xf32>
    %20 = vector.broadcast %19 : vector<1x32xf32> to vector<64x32xf32>
    %21 = arith.addf %17, %20 : vector<64x32xf32>
    %c0_19 = arith.constant 0 : index
    %c0_20 = arith.constant 0 : index
    %c0_21 = arith.constant 0 : index
    %22 = vector.load %arg4[%c0_19, %c0_20, %c0_21] : memref<3x32x32xf32, #tpu.memory_space<vmem>>, vector<1x32x32xf32>
    %23 = vector.shape_cast %22 : vector<1x32x32xf32> to vector<32x32xf32>
    %c1_22 = arith.constant 1 : index
    %c0_23 = arith.constant 0 : index
    %c0_24 = arith.constant 0 : index
    %24 = vector.load %arg4[%c1_22, %c0_23, %c0_24] : memref<3x32x32xf32, #tpu.memory_space<vmem>>, vector<1x32x32xf32>
    %25 = vector.shape_cast %24 : vector<1x32x32xf32> to vector<32x32xf32>
    %c2_25 = arith.constant 2 : index
    %c0_26 = arith.constant 0 : index
    %c0_27 = arith.constant 0 : index
    %26 = vector.load %arg4[%c2_25, %c0_26, %c0_27] : memref<3x32x32xf32, #tpu.memory_space<vmem>>, vector<1x32x32xf32>
    %27 = vector.shape_cast %26 : vector<1x32x32xf32> to vector<32x32xf32>
    %c0_28 = arith.constant 0 : index
    %c0_29 = arith.constant 0 : index
    %28 = vector.load %arg6[%c0_28, %c0_29] : memref<1x32xf32, #tpu.memory_space<vmem>>, vector<1x32xf32>
    %cst_30 = arith.constant 0.000000e+00 : f32
    %29 = vector.broadcast %cst_30 : f32 to vector<8x32xf32>
    %cst_31 = arith.constant 0.000000e+00 : f32
    %30 = vector.broadcast %cst_31 : f32 to vector<8x32xf32>
    %cst_32 = arith.constant dense<0.000000e+00> : vector<8x32xf32>
    %31 = tpu.matmul %29, %23, %cst_32 {dimension_numbers = #tpu.dot_dimension_numbers<[1], [0], [0], [1], [0, 0, 1, 1], [], []>} : vector<8x32xf32>, vector<32x32xf32>, vector<8x32xf32> -> vector<8x32xf32>
    %cst_33 = arith.constant dense<0.000000e+00> : vector<8x32xf32>
    %32 = tpu.matmul %29, %25, %cst_33 {dimension_numbers = #tpu.dot_dimension_numbers<[1], [0], [0], [1], [0, 0, 1, 1], [], []>} : vector<8x32xf32>, vector<32x32xf32>, vector<8x32xf32> -> vector<8x32xf32>
    %cst_34 = arith.constant dense<0.000000e+00> : vector<8x32xf32>
    %33 = tpu.matmul %29, %27, %cst_34 {dimension_numbers = #tpu.dot_dimension_numbers<[1], [0], [0], [1], [0, 0, 1, 1], [], []>} : vector<8x32xf32>, vector<32x32xf32>, vector<8x32xf32> -> vector<8x32xf32>
    %34 = vector.broadcast %28 : vector<1x32xf32> to vector<8x32xf32>
    %35 = arith.addf %33, %34 : vector<8x32xf32>
    %36 = vector.extract_strided_slice %7 {offsets = [0, 0], sizes = [8, 32], strides = [1, 1]} : vector<64x32xf32> to vector<8x32xf32>
    %37 = arith.addf %36, %31 : vector<8x32xf32>
    %cst_35 = arith.constant 0.000000e+00 : f32
    %38 = vector.broadcast %cst_35 : f32 to vector<8x32xf32>
    %39 = arith.subf %38, %37 : vector<8x32xf32>
    %40 = math.exp %39 : vector<8x32xf32>
    %cst_36 = arith.constant 1.000000e+00 : f32
    %41 = vector.broadcast %cst_36 : f32 to vector<8x32xf32>
    %42 = arith.addf %41, %40 : vector<8x32xf32>
    %cst_37 = arith.constant 1.000000e+00 : f32
    %43 = vector.broadcast %cst_37 : f32 to vector<8x32xf32>
    %44 = arith.divf %43, %42 : vector<8x32xf32>
    %45 = vector.extract_strided_slice %14 {offsets = [0, 0], sizes = [8, 32], strides = [1, 1]} : vector<64x32xf32> to vector<8x32xf32>
    %46 = arith.addf %45, %32 : vector<8x32xf32>
    %cst_38 = arith.constant 0.000000e+00 : f32
    %47 = vector.broadcast %cst_38 : f32 to vector<8x32xf32>
    %48 = arith.subf %47, %46 : vector<8x32xf32>
    %49 = math.exp %48 : vector<8x32xf32>
    %cst_39 = arith.constant 1.000000e+00 : f32
    %50 = vector.broadcast %cst_39 : f32 to vector<8x32xf32>
    %51 = arith.addf %50, %49 : vector<8x32xf32>
    %cst_40 = arith.constant 1.000000e+00 : f32
    %52 = vector.broadcast %cst_40 : f32 to vector<8x32xf32>
    %53 = arith.divf %52, %51 : vector<8x32xf32>
    %54 = vector.extract_strided_slice %21 {offsets = [0, 0], sizes = [8, 32], strides = [1, 1]} : vector<64x32xf32> to vector<8x32xf32>
    %55 = arith.mulf %44, %35 : vector<8x32xf32>
    %56 = arith.addf %54, %55 : vector<8x32xf32>
    %57 = math.tanh %56 : vector<8x32xf32>
    %58 = arith.subf %29, %57 : vector<8x32xf32>
    %59 = arith.mulf %53, %58 : vector<8x32xf32>
    %60 = arith.addf %57, %59 : vector<8x32xf32>
    %c0_41 = arith.constant 0 : index
    %c0_42 = arith.constant 0 : index
    %c0_43 = arith.constant 0 : index
    %61 = vector.load %arg1[%c0_41, %c0_42, %c0_43] : memref<8x8x1xf32, #tpu.memory_space<vmem>>, vector<1x8x1xf32>
    %62 = vector.shape_cast %61 : vector<1x8x1xf32> to vector<8x1xf32>
    %c0_44 = arith.constant 0 : index
    %c0_45 = arith.constant 0 : index
    %c0_46 = arith.constant 0 : index
    %63 = vector.load %arg2[%c0_44, %c0_45, %c0_46] : memref<8x8x1xf32, #tpu.memory_space<vmem>>, vector<1x8x1xf32>
    %64 = vector.shape_cast %63 : vector<1x8x1xf32> to vector<8x1xf32>
    %65 = arith.subf %60, %29 : vector<8x32xf32>
    %66 = vector.broadcast %62 : vector<8x1xf32> to vector<8x32xf32>
    %67 = arith.mulf %66, %65 : vector<8x32xf32>
    %68 = arith.addf %29, %67 : vector<8x32xf32>
    %69 = vector.broadcast %64 : vector<8x1xf32> to vector<8x32xf32>
    %70 = arith.mulf %69, %60 : vector<8x32xf32>
    %71 = arith.addf %30, %70 : vector<8x32xf32>
    %cst_47 = arith.constant dense<0.000000e+00> : vector<8x32xf32>
    %72 = tpu.matmul %68, %23, %cst_47 {dimension_numbers = #tpu.dot_dimension_numbers<[1], [0], [0], [1], [0, 0, 1, 1], [], []>} : vector<8x32xf32>, vector<32x32xf32>, vector<8x32xf32> -> vector<8x32xf32>
    %cst_48 = arith.constant dense<0.000000e+00> : vector<8x32xf32>
    %73 = tpu.matmul %68, %25, %cst_48 {dimension_numbers = #tpu.dot_dimension_numbers<[1], [0], [0], [1], [0, 0, 1, 1], [], []>} : vector<8x32xf32>, vector<32x32xf32>, vector<8x32xf32> -> vector<8x32xf32>
    %cst_49 = arith.constant dense<0.000000e+00> : vector<8x32xf32>
    %74 = tpu.matmul %68, %27, %cst_49 {dimension_numbers = #tpu.dot_dimension_numbers<[1], [0], [0], [1], [0, 0, 1, 1], [], []>} : vector<8x32xf32>, vector<32x32xf32>, vector<8x32xf32> -> vector<8x32xf32>
    %75 = vector.broadcast %28 : vector<1x32xf32> to vector<8x32xf32>
    %76 = arith.addf %74, %75 : vector<8x32xf32>
    %77 = vector.extract_strided_slice %7 {offsets = [8, 0], sizes = [8, 32], strides = [1, 1]} : vector<64x32xf32> to vector<8x32xf32>
    %78 = arith.addf %77, %72 : vector<8x32xf32>
    %cst_50 = arith.constant 0.000000e+00 : f32
    %79 = vector.broadcast %cst_50 : f32 to vector<8x32xf32>
    %80 = arith.subf %79, %78 : vector<8x32xf32>
    %81 = math.exp %80 : vector<8x32xf32>
    %cst_51 = arith.constant 1.000000e+00 : f32
    %82 = vector.broadcast %cst_51 : f32 to vector<8x32xf32>
    %83 = arith.addf %82, %81 : vector<8x32xf32>
    %cst_52 = arith.constant 1.000000e+00 : f32
    %84 = vector.broadcast %cst_52 : f32 to vector<8x32xf32>
    %85 = arith.divf %84, %83 : vector<8x32xf32>
    %86 = vector.extract_strided_slice %14 {offsets = [8, 0], sizes = [8, 32], strides = [1, 1]} : vector<64x32xf32> to vector<8x32xf32>
    %87 = arith.addf %86, %73 : vector<8x32xf32>
    %cst_53 = arith.constant 0.000000e+00 : f32
    %88 = vector.broadcast %cst_53 : f32 to vector<8x32xf32>
    %89 = arith.subf %88, %87 : vector<8x32xf32>
    %90 = math.exp %89 : vector<8x32xf32>
    %cst_54 = arith.constant 1.000000e+00 : f32
    %91 = vector.broadcast %cst_54 : f32 to vector<8x32xf32>
    %92 = arith.addf %91, %90 : vector<8x32xf32>
    %cst_55 = arith.constant 1.000000e+00 : f32
    %93 = vector.broadcast %cst_55 : f32 to vector<8x32xf32>
    %94 = arith.divf %93, %92 : vector<8x32xf32>
    %95 = vector.extract_strided_slice %21 {offsets = [8, 0], sizes = [8, 32], strides = [1, 1]} : vector<64x32xf32> to vector<8x32xf32>
    %96 = arith.mulf %85, %76 : vector<8x32xf32>
    %97 = arith.addf %95, %96 : vector<8x32xf32>
    %98 = math.tanh %97 : vector<8x32xf32>
    %99 = arith.subf %68, %98 : vector<8x32xf32>
    %100 = arith.mulf %94, %99 : vector<8x32xf32>
    %101 = arith.addf %98, %100 : vector<8x32xf32>
    %c1_56 = arith.constant 1 : index
    %c0_57 = arith.constant 0 : index
    %c0_58 = arith.constant 0 : index
    %102 = vector.load %arg1[%c1_56, %c0_57, %c0_58] : memref<8x8x1xf32, #tpu.memory_space<vmem>>, vector<1x8x1xf32>
    %103 = vector.shape_cast %102 : vector<1x8x1xf32> to vector<8x1xf32>
    %c1_59 = arith.constant 1 : index
    %c0_60 = arith.constant 0 : index
    %c0_61 = arith.constant 0 : index
    %104 = vector.load %arg2[%c1_59, %c0_60, %c0_61] : memref<8x8x1xf32, #tpu.memory_space<vmem>>, vector<1x8x1xf32>
    %105 = vector.shape_cast %104 : vector<1x8x1xf32> to vector<8x1xf32>
    %106 = arith.subf %101, %68 : vector<8x32xf32>
    %107 = vector.broadcast %103 : vector<8x1xf32> to vector<8x32xf32>
    %108 = arith.mulf %107, %106 : vector<8x32xf32>
    %109 = arith.addf %68, %108 : vector<8x32xf32>
    %110 = vector.broadcast %105 : vector<8x1xf32> to vector<8x32xf32>
    %111 = arith.mulf %110, %101 : vector<8x32xf32>
    %112 = arith.addf %71, %111 : vector<8x32xf32>
    %cst_62 = arith.constant dense<0.000000e+00> : vector<8x32xf32>
    %113 = tpu.matmul %109, %23, %cst_62 {dimension_numbers = #tpu.dot_dimension_numbers<[1], [0], [0], [1], [0, 0, 1, 1], [], []>} : vector<8x32xf32>, vector<32x32xf32>, vector<8x32xf32> -> vector<8x32xf32>
    %cst_63 = arith.constant dense<0.000000e+00> : vector<8x32xf32>
    %114 = tpu.matmul %109, %25, %cst_63 {dimension_numbers = #tpu.dot_dimension_numbers<[1], [0], [0], [1], [0, 0, 1, 1], [], []>} : vector<8x32xf32>, vector<32x32xf32>, vector<8x32xf32> -> vector<8x32xf32>
    %cst_64 = arith.constant dense<0.000000e+00> : vector<8x32xf32>
    %115 = tpu.matmul %109, %27, %cst_64 {dimension_numbers = #tpu.dot_dimension_numbers<[1], [0], [0], [1], [0, 0, 1, 1], [], []>} : vector<8x32xf32>, vector<32x32xf32>, vector<8x32xf32> -> vector<8x32xf32>
    %116 = vector.broadcast %28 : vector<1x32xf32> to vector<8x32xf32>
    %117 = arith.addf %115, %116 : vector<8x32xf32>
    %118 = vector.extract_strided_slice %7 {offsets = [16, 0], sizes = [8, 32], strides = [1, 1]} : vector<64x32xf32> to vector<8x32xf32>
    %119 = arith.addf %118, %113 : vector<8x32xf32>
    %cst_65 = arith.constant 0.000000e+00 : f32
    %120 = vector.broadcast %cst_65 : f32 to vector<8x32xf32>
    %121 = arith.subf %120, %119 : vector<8x32xf32>
    %122 = math.exp %121 : vector<8x32xf32>
    %cst_66 = arith.constant 1.000000e+00 : f32
    %123 = vector.broadcast %cst_66 : f32 to vector<8x32xf32>
    %124 = arith.addf %123, %122 : vector<8x32xf32>
    %cst_67 = arith.constant 1.000000e+00 : f32
    %125 = vector.broadcast %cst_67 : f32 to vector<8x32xf32>
    %126 = arith.divf %125, %124 : vector<8x32xf32>
    %127 = vector.extract_strided_slice %14 {offsets = [16, 0], sizes = [8, 32], strides = [1, 1]} : vector<64x32xf32> to vector<8x32xf32>
    %128 = arith.addf %127, %114 : vector<8x32xf32>
    %cst_68 = arith.constant 0.000000e+00 : f32
    %129 = vector.broadcast %cst_68 : f32 to vector<8x32xf32>
    %130 = arith.subf %129, %128 : vector<8x32xf32>
    %131 = math.exp %130 : vector<8x32xf32>
    %cst_69 = arith.constant 1.000000e+00 : f32
    %132 = vector.broadcast %cst_69 : f32 to vector<8x32xf32>
    %133 = arith.addf %132, %131 : vector<8x32xf32>
    %cst_70 = arith.constant 1.000000e+00 : f32
    %134 = vector.broadcast %cst_70 : f32 to vector<8x32xf32>
    %135 = arith.divf %134, %133 : vector<8x32xf32>
    %136 = vector.extract_strided_slice %21 {offsets = [16, 0], sizes = [8, 32], strides = [1, 1]} : vector<64x32xf32> to vector<8x32xf32>
    %137 = arith.mulf %126, %117 : vector<8x32xf32>
    %138 = arith.addf %136, %137 : vector<8x32xf32>
    %139 = math.tanh %138 : vector<8x32xf32>
    %140 = arith.subf %109, %139 : vector<8x32xf32>
    %141 = arith.mulf %135, %140 : vector<8x32xf32>
    %142 = arith.addf %139, %141 : vector<8x32xf32>
    %c2_71 = arith.constant 2 : index
    %c0_72 = arith.constant 0 : index
    %c0_73 = arith.constant 0 : index
    %143 = vector.load %arg1[%c2_71, %c0_72, %c0_73] : memref<8x8x1xf32, #tpu.memory_space<vmem>>, vector<1x8x1xf32>
    %144 = vector.shape_cast %143 : vector<1x8x1xf32> to vector<8x1xf32>
    %c2_74 = arith.constant 2 : index
    %c0_75 = arith.constant 0 : index
    %c0_76 = arith.constant 0 : index
    %145 = vector.load %arg2[%c2_74, %c0_75, %c0_76] : memref<8x8x1xf32, #tpu.memory_space<vmem>>, vector<1x8x1xf32>
    %146 = vector.shape_cast %145 : vector<1x8x1xf32> to vector<8x1xf32>
    %147 = arith.subf %142, %109 : vector<8x32xf32>
    %148 = vector.broadcast %144 : vector<8x1xf32> to vector<8x32xf32>
    %149 = arith.mulf %148, %147 : vector<8x32xf32>
    %150 = arith.addf %109, %149 : vector<8x32xf32>
    %151 = vector.broadcast %146 : vector<8x1xf32> to vector<8x32xf32>
    %152 = arith.mulf %151, %142 : vector<8x32xf32>
    %153 = arith.addf %112, %152 : vector<8x32xf32>
    %cst_77 = arith.constant dense<0.000000e+00> : vector<8x32xf32>
    %154 = tpu.matmul %150, %23, %cst_77 {dimension_numbers = #tpu.dot_dimension_numbers<[1], [0], [0], [1], [0, 0, 1, 1], [], []>} : vector<8x32xf32>, vector<32x32xf32>, vector<8x32xf32> -> vector<8x32xf32>
    %cst_78 = arith.constant dense<0.000000e+00> : vector<8x32xf32>
    %155 = tpu.matmul %150, %25, %cst_78 {dimension_numbers = #tpu.dot_dimension_numbers<[1], [0], [0], [1], [0, 0, 1, 1], [], []>} : vector<8x32xf32>, vector<32x32xf32>, vector<8x32xf32> -> vector<8x32xf32>
    %cst_79 = arith.constant dense<0.000000e+00> : vector<8x32xf32>
    %156 = tpu.matmul %150, %27, %cst_79 {dimension_numbers = #tpu.dot_dimension_numbers<[1], [0], [0], [1], [0, 0, 1, 1], [], []>} : vector<8x32xf32>, vector<32x32xf32>, vector<8x32xf32> -> vector<8x32xf32>
    %157 = vector.broadcast %28 : vector<1x32xf32> to vector<8x32xf32>
    %158 = arith.addf %156, %157 : vector<8x32xf32>
    %159 = vector.extract_strided_slice %7 {offsets = [24, 0], sizes = [8, 32], strides = [1, 1]} : vector<64x32xf32> to vector<8x32xf32>
    %160 = arith.addf %159, %154 : vector<8x32xf32>
    %cst_80 = arith.constant 0.000000e+00 : f32
    %161 = vector.broadcast %cst_80 : f32 to vector<8x32xf32>
    %162 = arith.subf %161, %160 : vector<8x32xf32>
    %163 = math.exp %162 : vector<8x32xf32>
    %cst_81 = arith.constant 1.000000e+00 : f32
    %164 = vector.broadcast %cst_81 : f32 to vector<8x32xf32>
    %165 = arith.addf %164, %163 : vector<8x32xf32>
    %cst_82 = arith.constant 1.000000e+00 : f32
    %166 = vector.broadcast %cst_82 : f32 to vector<8x32xf32>
    %167 = arith.divf %166, %165 : vector<8x32xf32>
    %168 = vector.extract_strided_slice %14 {offsets = [24, 0], sizes = [8, 32], strides = [1, 1]} : vector<64x32xf32> to vector<8x32xf32>
    %169 = arith.addf %168, %155 : vector<8x32xf32>
    %cst_83 = arith.constant 0.000000e+00 : f32
    %170 = vector.broadcast %cst_83 : f32 to vector<8x32xf32>
    %171 = arith.subf %170, %169 : vector<8x32xf32>
    %172 = math.exp %171 : vector<8x32xf32>
    %cst_84 = arith.constant 1.000000e+00 : f32
    %173 = vector.broadcast %cst_84 : f32 to vector<8x32xf32>
    %174 = arith.addf %173, %172 : vector<8x32xf32>
    %cst_85 = arith.constant 1.000000e+00 : f32
    %175 = vector.broadcast %cst_85 : f32 to vector<8x32xf32>
    %176 = arith.divf %175, %174 : vector<8x32xf32>
    %177 = vector.extract_strided_slice %21 {offsets = [24, 0], sizes = [8, 32], strides = [1, 1]} : vector<64x32xf32> to vector<8x32xf32>
    %178 = arith.mulf %167, %158 : vector<8x32xf32>
    %179 = arith.addf %177, %178 : vector<8x32xf32>
    %180 = math.tanh %179 : vector<8x32xf32>
    %181 = arith.subf %150, %180 : vector<8x32xf32>
    %182 = arith.mulf %176, %181 : vector<8x32xf32>
    %183 = arith.addf %180, %182 : vector<8x32xf32>
    %c3 = arith.constant 3 : index
    %c0_86 = arith.constant 0 : index
    %c0_87 = arith.constant 0 : index
    %184 = vector.load %arg1[%c3, %c0_86, %c0_87] : memref<8x8x1xf32, #tpu.memory_space<vmem>>, vector<1x8x1xf32>
    %185 = vector.shape_cast %184 : vector<1x8x1xf32> to vector<8x1xf32>
    %c3_88 = arith.constant 3 : index
    %c0_89 = arith.constant 0 : index
    %c0_90 = arith.constant 0 : index
    %186 = vector.load %arg2[%c3_88, %c0_89, %c0_90] : memref<8x8x1xf32, #tpu.memory_space<vmem>>, vector<1x8x1xf32>
    %187 = vector.shape_cast %186 : vector<1x8x1xf32> to vector<8x1xf32>
    %188 = arith.subf %183, %150 : vector<8x32xf32>
    %189 = vector.broadcast %185 : vector<8x1xf32> to vector<8x32xf32>
    %190 = arith.mulf %189, %188 : vector<8x32xf32>
    %191 = arith.addf %150, %190 : vector<8x32xf32>
    %192 = vector.broadcast %187 : vector<8x1xf32> to vector<8x32xf32>
    %193 = arith.mulf %192, %183 : vector<8x32xf32>
    %194 = arith.addf %153, %193 : vector<8x32xf32>
    %cst_91 = arith.constant dense<0.000000e+00> : vector<8x32xf32>
    %195 = tpu.matmul %191, %23, %cst_91 {dimension_numbers = #tpu.dot_dimension_numbers<[1], [0], [0], [1], [0, 0, 1, 1], [], []>} : vector<8x32xf32>, vector<32x32xf32>, vector<8x32xf32> -> vector<8x32xf32>
    %cst_92 = arith.constant dense<0.000000e+00> : vector<8x32xf32>
    %196 = tpu.matmul %191, %25, %cst_92 {dimension_numbers = #tpu.dot_dimension_numbers<[1], [0], [0], [1], [0, 0, 1, 1], [], []>} : vector<8x32xf32>, vector<32x32xf32>, vector<8x32xf32> -> vector<8x32xf32>
    %cst_93 = arith.constant dense<0.000000e+00> : vector<8x32xf32>
    %197 = tpu.matmul %191, %27, %cst_93 {dimension_numbers = #tpu.dot_dimension_numbers<[1], [0], [0], [1], [0, 0, 1, 1], [], []>} : vector<8x32xf32>, vector<32x32xf32>, vector<8x32xf32> -> vector<8x32xf32>
    %198 = vector.broadcast %28 : vector<1x32xf32> to vector<8x32xf32>
    %199 = arith.addf %197, %198 : vector<8x32xf32>
    %200 = vector.extract_strided_slice %7 {offsets = [32, 0], sizes = [8, 32], strides = [1, 1]} : vector<64x32xf32> to vector<8x32xf32>
    %201 = arith.addf %200, %195 : vector<8x32xf32>
    %cst_94 = arith.constant 0.000000e+00 : f32
    %202 = vector.broadcast %cst_94 : f32 to vector<8x32xf32>
    %203 = arith.subf %202, %201 : vector<8x32xf32>
    %204 = math.exp %203 : vector<8x32xf32>
    %cst_95 = arith.constant 1.000000e+00 : f32
    %205 = vector.broadcast %cst_95 : f32 to vector<8x32xf32>
    %206 = arith.addf %205, %204 : vector<8x32xf32>
    %cst_96 = arith.constant 1.000000e+00 : f32
    %207 = vector.broadcast %cst_96 : f32 to vector<8x32xf32>
    %208 = arith.divf %207, %206 : vector<8x32xf32>
    %209 = vector.extract_strided_slice %14 {offsets = [32, 0], sizes = [8, 32], strides = [1, 1]} : vector<64x32xf32> to vector<8x32xf32>
    %210 = arith.addf %209, %196 : vector<8x32xf32>
    %cst_97 = arith.constant 0.000000e+00 : f32
    %211 = vector.broadcast %cst_97 : f32 to vector<8x32xf32>
    %212 = arith.subf %211, %210 : vector<8x32xf32>
    %213 = math.exp %212 : vector<8x32xf32>
    %cst_98 = arith.constant 1.000000e+00 : f32
    %214 = vector.broadcast %cst_98 : f32 to vector<8x32xf32>
    %215 = arith.addf %214, %213 : vector<8x32xf32>
    %cst_99 = arith.constant 1.000000e+00 : f32
    %216 = vector.broadcast %cst_99 : f32 to vector<8x32xf32>
    %217 = arith.divf %216, %215 : vector<8x32xf32>
    %218 = vector.extract_strided_slice %21 {offsets = [32, 0], sizes = [8, 32], strides = [1, 1]} : vector<64x32xf32> to vector<8x32xf32>
    %219 = arith.mulf %208, %199 : vector<8x32xf32>
    %220 = arith.addf %218, %219 : vector<8x32xf32>
    %221 = math.tanh %220 : vector<8x32xf32>
    %222 = arith.subf %191, %221 : vector<8x32xf32>
    %223 = arith.mulf %217, %222 : vector<8x32xf32>
    %224 = arith.addf %221, %223 : vector<8x32xf32>
    %c4 = arith.constant 4 : index
    %c0_100 = arith.constant 0 : index
    %c0_101 = arith.constant 0 : index
    %225 = vector.load %arg1[%c4, %c0_100, %c0_101] : memref<8x8x1xf32, #tpu.memory_space<vmem>>, vector<1x8x1xf32>
    %226 = vector.shape_cast %225 : vector<1x8x1xf32> to vector<8x1xf32>
    %c4_102 = arith.constant 4 : index
    %c0_103 = arith.constant 0 : index
    %c0_104 = arith.constant 0 : index
    %227 = vector.load %arg2[%c4_102, %c0_103, %c0_104] : memref<8x8x1xf32, #tpu.memory_space<vmem>>, vector<1x8x1xf32>
    %228 = vector.shape_cast %227 : vector<1x8x1xf32> to vector<8x1xf32>
    %229 = arith.subf %224, %191 : vector<8x32xf32>
    %230 = vector.broadcast %226 : vector<8x1xf32> to vector<8x32xf32>
    %231 = arith.mulf %230, %229 : vector<8x32xf32>
    %232 = arith.addf %191, %231 : vector<8x32xf32>
    %233 = vector.broadcast %228 : vector<8x1xf32> to vector<8x32xf32>
    %234 = arith.mulf %233, %224 : vector<8x32xf32>
    %235 = arith.addf %194, %234 : vector<8x32xf32>
    %cst_105 = arith.constant dense<0.000000e+00> : vector<8x32xf32>
    %236 = tpu.matmul %232, %23, %cst_105 {dimension_numbers = #tpu.dot_dimension_numbers<[1], [0], [0], [1], [0, 0, 1, 1], [], []>} : vector<8x32xf32>, vector<32x32xf32>, vector<8x32xf32> -> vector<8x32xf32>
    %cst_106 = arith.constant dense<0.000000e+00> : vector<8x32xf32>
    %237 = tpu.matmul %232, %25, %cst_106 {dimension_numbers = #tpu.dot_dimension_numbers<[1], [0], [0], [1], [0, 0, 1, 1], [], []>} : vector<8x32xf32>, vector<32x32xf32>, vector<8x32xf32> -> vector<8x32xf32>
    %cst_107 = arith.constant dense<0.000000e+00> : vector<8x32xf32>
    %238 = tpu.matmul %232, %27, %cst_107 {dimension_numbers = #tpu.dot_dimension_numbers<[1], [0], [0], [1], [0, 0, 1, 1], [], []>} : vector<8x32xf32>, vector<32x32xf32>, vector<8x32xf32> -> vector<8x32xf32>
    %239 = vector.broadcast %28 : vector<1x32xf32> to vector<8x32xf32>
    %240 = arith.addf %238, %239 : vector<8x32xf32>
    %241 = vector.extract_strided_slice %7 {offsets = [40, 0], sizes = [8, 32], strides = [1, 1]} : vector<64x32xf32> to vector<8x32xf32>
    %242 = arith.addf %241, %236 : vector<8x32xf32>
    %cst_108 = arith.constant 0.000000e+00 : f32
    %243 = vector.broadcast %cst_108 : f32 to vector<8x32xf32>
    %244 = arith.subf %243, %242 : vector<8x32xf32>
    %245 = math.exp %244 : vector<8x32xf32>
    %cst_109 = arith.constant 1.000000e+00 : f32
    %246 = vector.broadcast %cst_109 : f32 to vector<8x32xf32>
    %247 = arith.addf %246, %245 : vector<8x32xf32>
    %cst_110 = arith.constant 1.000000e+00 : f32
    %248 = vector.broadcast %cst_110 : f32 to vector<8x32xf32>
    %249 = arith.divf %248, %247 : vector<8x32xf32>
    %250 = vector.extract_strided_slice %14 {offsets = [40, 0], sizes = [8, 32], strides = [1, 1]} : vector<64x32xf32> to vector<8x32xf32>
    %251 = arith.addf %250, %237 : vector<8x32xf32>
    %cst_111 = arith.constant 0.000000e+00 : f32
    %252 = vector.broadcast %cst_111 : f32 to vector<8x32xf32>
    %253 = arith.subf %252, %251 : vector<8x32xf32>
    %254 = math.exp %253 : vector<8x32xf32>
    %cst_112 = arith.constant 1.000000e+00 : f32
    %255 = vector.broadcast %cst_112 : f32 to vector<8x32xf32>
    %256 = arith.addf %255, %254 : vector<8x32xf32>
    %cst_113 = arith.constant 1.000000e+00 : f32
    %257 = vector.broadcast %cst_113 : f32 to vector<8x32xf32>
    %258 = arith.divf %257, %256 : vector<8x32xf32>
    %259 = vector.extract_strided_slice %21 {offsets = [40, 0], sizes = [8, 32], strides = [1, 1]} : vector<64x32xf32> to vector<8x32xf32>
    %260 = arith.mulf %249, %240 : vector<8x32xf32>
    %261 = arith.addf %259, %260 : vector<8x32xf32>
    %262 = math.tanh %261 : vector<8x32xf32>
    %263 = arith.subf %232, %262 : vector<8x32xf32>
    %264 = arith.mulf %258, %263 : vector<8x32xf32>
    %265 = arith.addf %262, %264 : vector<8x32xf32>
    %c5 = arith.constant 5 : index
    %c0_114 = arith.constant 0 : index
    %c0_115 = arith.constant 0 : index
    %266 = vector.load %arg1[%c5, %c0_114, %c0_115] : memref<8x8x1xf32, #tpu.memory_space<vmem>>, vector<1x8x1xf32>
    %267 = vector.shape_cast %266 : vector<1x8x1xf32> to vector<8x1xf32>
    %c5_116 = arith.constant 5 : index
    %c0_117 = arith.constant 0 : index
    %c0_118 = arith.constant 0 : index
    %268 = vector.load %arg2[%c5_116, %c0_117, %c0_118] : memref<8x8x1xf32, #tpu.memory_space<vmem>>, vector<1x8x1xf32>
    %269 = vector.shape_cast %268 : vector<1x8x1xf32> to vector<8x1xf32>
    %270 = arith.subf %265, %232 : vector<8x32xf32>
    %271 = vector.broadcast %267 : vector<8x1xf32> to vector<8x32xf32>
    %272 = arith.mulf %271, %270 : vector<8x32xf32>
    %273 = arith.addf %232, %272 : vector<8x32xf32>
    %274 = vector.broadcast %269 : vector<8x1xf32> to vector<8x32xf32>
    %275 = arith.mulf %274, %265 : vector<8x32xf32>
    %276 = arith.addf %235, %275 : vector<8x32xf32>
    %cst_119 = arith.constant dense<0.000000e+00> : vector<8x32xf32>
    %277 = tpu.matmul %273, %23, %cst_119 {dimension_numbers = #tpu.dot_dimension_numbers<[1], [0], [0], [1], [0, 0, 1, 1], [], []>} : vector<8x32xf32>, vector<32x32xf32>, vector<8x32xf32> -> vector<8x32xf32>
    %cst_120 = arith.constant dense<0.000000e+00> : vector<8x32xf32>
    %278 = tpu.matmul %273, %25, %cst_120 {dimension_numbers = #tpu.dot_dimension_numbers<[1], [0], [0], [1], [0, 0, 1, 1], [], []>} : vector<8x32xf32>, vector<32x32xf32>, vector<8x32xf32> -> vector<8x32xf32>
    %cst_121 = arith.constant dense<0.000000e+00> : vector<8x32xf32>
    %279 = tpu.matmul %273, %27, %cst_121 {dimension_numbers = #tpu.dot_dimension_numbers<[1], [0], [0], [1], [0, 0, 1, 1], [], []>} : vector<8x32xf32>, vector<32x32xf32>, vector<8x32xf32> -> vector<8x32xf32>
    %280 = vector.broadcast %28 : vector<1x32xf32> to vector<8x32xf32>
    %281 = arith.addf %279, %280 : vector<8x32xf32>
    %282 = vector.extract_strided_slice %7 {offsets = [48, 0], sizes = [8, 32], strides = [1, 1]} : vector<64x32xf32> to vector<8x32xf32>
    %283 = arith.addf %282, %277 : vector<8x32xf32>
    %cst_122 = arith.constant 0.000000e+00 : f32
    %284 = vector.broadcast %cst_122 : f32 to vector<8x32xf32>
    %285 = arith.subf %284, %283 : vector<8x32xf32>
    %286 = math.exp %285 : vector<8x32xf32>
    %cst_123 = arith.constant 1.000000e+00 : f32
    %287 = vector.broadcast %cst_123 : f32 to vector<8x32xf32>
    %288 = arith.addf %287, %286 : vector<8x32xf32>
    %cst_124 = arith.constant 1.000000e+00 : f32
    %289 = vector.broadcast %cst_124 : f32 to vector<8x32xf32>
    %290 = arith.divf %289, %288 : vector<8x32xf32>
    %291 = vector.extract_strided_slice %14 {offsets = [48, 0], sizes = [8, 32], strides = [1, 1]} : vector<64x32xf32> to vector<8x32xf32>
    %292 = arith.addf %291, %278 : vector<8x32xf32>
    %cst_125 = arith.constant 0.000000e+00 : f32
    %293 = vector.broadcast %cst_125 : f32 to vector<8x32xf32>
    %294 = arith.subf %293, %292 : vector<8x32xf32>
    %295 = math.exp %294 : vector<8x32xf32>
    %cst_126 = arith.constant 1.000000e+00 : f32
    %296 = vector.broadcast %cst_126 : f32 to vector<8x32xf32>
    %297 = arith.addf %296, %295 : vector<8x32xf32>
    %cst_127 = arith.constant 1.000000e+00 : f32
    %298 = vector.broadcast %cst_127 : f32 to vector<8x32xf32>
    %299 = arith.divf %298, %297 : vector<8x32xf32>
    %300 = vector.extract_strided_slice %21 {offsets = [48, 0], sizes = [8, 32], strides = [1, 1]} : vector<64x32xf32> to vector<8x32xf32>
    %301 = arith.mulf %290, %281 : vector<8x32xf32>
    %302 = arith.addf %300, %301 : vector<8x32xf32>
    %303 = math.tanh %302 : vector<8x32xf32>
    %304 = arith.subf %273, %303 : vector<8x32xf32>
    %305 = arith.mulf %299, %304 : vector<8x32xf32>
    %306 = arith.addf %303, %305 : vector<8x32xf32>
    %c6 = arith.constant 6 : index
    %c0_128 = arith.constant 0 : index
    %c0_129 = arith.constant 0 : index
    %307 = vector.load %arg1[%c6, %c0_128, %c0_129] : memref<8x8x1xf32, #tpu.memory_space<vmem>>, vector<1x8x1xf32>
    %308 = vector.shape_cast %307 : vector<1x8x1xf32> to vector<8x1xf32>
    %c6_130 = arith.constant 6 : index
    %c0_131 = arith.constant 0 : index
    %c0_132 = arith.constant 0 : index
    %309 = vector.load %arg2[%c6_130, %c0_131, %c0_132] : memref<8x8x1xf32, #tpu.memory_space<vmem>>, vector<1x8x1xf32>
    %310 = vector.shape_cast %309 : vector<1x8x1xf32> to vector<8x1xf32>
    %311 = arith.subf %306, %273 : vector<8x32xf32>
    %312 = vector.broadcast %308 : vector<8x1xf32> to vector<8x32xf32>
    %313 = arith.mulf %312, %311 : vector<8x32xf32>
    %314 = arith.addf %273, %313 : vector<8x32xf32>
    %315 = vector.broadcast %310 : vector<8x1xf32> to vector<8x32xf32>
    %316 = arith.mulf %315, %306 : vector<8x32xf32>
    %317 = arith.addf %276, %316 : vector<8x32xf32>
    %cst_133 = arith.constant dense<0.000000e+00> : vector<8x32xf32>
    %318 = tpu.matmul %314, %23, %cst_133 {dimension_numbers = #tpu.dot_dimension_numbers<[1], [0], [0], [1], [0, 0, 1, 1], [], []>} : vector<8x32xf32>, vector<32x32xf32>, vector<8x32xf32> -> vector<8x32xf32>
    %cst_134 = arith.constant dense<0.000000e+00> : vector<8x32xf32>
    %319 = tpu.matmul %314, %25, %cst_134 {dimension_numbers = #tpu.dot_dimension_numbers<[1], [0], [0], [1], [0, 0, 1, 1], [], []>} : vector<8x32xf32>, vector<32x32xf32>, vector<8x32xf32> -> vector<8x32xf32>
    %cst_135 = arith.constant dense<0.000000e+00> : vector<8x32xf32>
    %320 = tpu.matmul %314, %27, %cst_135 {dimension_numbers = #tpu.dot_dimension_numbers<[1], [0], [0], [1], [0, 0, 1, 1], [], []>} : vector<8x32xf32>, vector<32x32xf32>, vector<8x32xf32> -> vector<8x32xf32>
    %321 = vector.broadcast %28 : vector<1x32xf32> to vector<8x32xf32>
    %322 = arith.addf %320, %321 : vector<8x32xf32>
    %323 = vector.extract_strided_slice %7 {offsets = [56, 0], sizes = [8, 32], strides = [1, 1]} : vector<64x32xf32> to vector<8x32xf32>
    %324 = arith.addf %323, %318 : vector<8x32xf32>
    %cst_136 = arith.constant 0.000000e+00 : f32
    %325 = vector.broadcast %cst_136 : f32 to vector<8x32xf32>
    %326 = arith.subf %325, %324 : vector<8x32xf32>
    %327 = math.exp %326 : vector<8x32xf32>
    %cst_137 = arith.constant 1.000000e+00 : f32
    %328 = vector.broadcast %cst_137 : f32 to vector<8x32xf32>
    %329 = arith.addf %328, %327 : vector<8x32xf32>
    %cst_138 = arith.constant 1.000000e+00 : f32
    %330 = vector.broadcast %cst_138 : f32 to vector<8x32xf32>
    %331 = arith.divf %330, %329 : vector<8x32xf32>
    %332 = vector.extract_strided_slice %14 {offsets = [56, 0], sizes = [8, 32], strides = [1, 1]} : vector<64x32xf32> to vector<8x32xf32>
    %333 = arith.addf %332, %319 : vector<8x32xf32>
    %cst_139 = arith.constant 0.000000e+00 : f32
    %334 = vector.broadcast %cst_139 : f32 to vector<8x32xf32>
    %335 = arith.subf %334, %333 : vector<8x32xf32>
    %336 = math.exp %335 : vector<8x32xf32>
    %cst_140 = arith.constant 1.000000e+00 : f32
    %337 = vector.broadcast %cst_140 : f32 to vector<8x32xf32>
    %338 = arith.addf %337, %336 : vector<8x32xf32>
    %cst_141 = arith.constant 1.000000e+00 : f32
    %339 = vector.broadcast %cst_141 : f32 to vector<8x32xf32>
    %340 = arith.divf %339, %338 : vector<8x32xf32>
    %341 = vector.extract_strided_slice %21 {offsets = [56, 0], sizes = [8, 32], strides = [1, 1]} : vector<64x32xf32> to vector<8x32xf32>
    %342 = arith.mulf %331, %322 : vector<8x32xf32>
    %343 = arith.addf %341, %342 : vector<8x32xf32>
    %344 = math.tanh %343 : vector<8x32xf32>
    %345 = arith.subf %314, %344 : vector<8x32xf32>
    %346 = arith.mulf %340, %345 : vector<8x32xf32>
    %347 = arith.addf %344, %346 : vector<8x32xf32>
    %c7 = arith.constant 7 : index
    %c0_142 = arith.constant 0 : index
    %c0_143 = arith.constant 0 : index
    %348 = vector.load %arg2[%c7, %c0_142, %c0_143] : memref<8x8x1xf32, #tpu.memory_space<vmem>>, vector<1x8x1xf32>
    %349 = vector.shape_cast %348 : vector<1x8x1xf32> to vector<8x1xf32>
    %350 = vector.broadcast %349 : vector<8x1xf32> to vector<8x32xf32>
    %351 = arith.mulf %350, %347 : vector<8x32xf32>
    %352 = arith.addf %317, %351 : vector<8x32xf32>
    %c0_144 = arith.constant 0 : index
    %c0_145 = arith.constant 0 : index
    %353 = vector.load %arg7[%c0_144, %c0_145] : memref<1x1xf32, #tpu.memory_space<vmem>>, vector<1x1xf32>
    %354 = vector.broadcast %353 : vector<1x1xf32> to vector<8x32xf32>
    %355 = arith.addf %352, %354 : vector<8x32xf32>
    %356 = math.tanh %355 : vector<8x32xf32>
    %c0_146 = arith.constant 0 : index
    %c0_147 = arith.constant 0 : index
    %357 = vector.load %arg8[%c0_146, %c0_147] : memref<8x32xf32, #tpu.memory_space<vmem>>, vector<8x32xf32>
    tpu.vector_store %arg8[%c0_146, %c0_147], %356 {strides = array<i32>} : memref<8x32xf32, #tpu.memory_space<vmem>>, vector<8x32xf32>,
    return
  }
}

</mosaic_0001>

<llo_original>
// kernel: tpu_custom_call.1
$region0: #{tpu_custom_call.1}
  #allocation0 [shape = 'u32[]', space=smem, size = 0x4, offset = 0x4, fixed_abs, tag = 'smem constant byte address 0x4 - core index']
  #allocation1 [shape = 'u32[144,128]{1,0:T(1,128)}', space=vmem, size = 0x12000, scoped, tag = 'internal scratch']
  #allocation2 [shape = 'f32[1,1]{1,0:T(1,128)S(1)}', space=vmem, size = 0x200, scoped, tag = 'scoped memory for tpu_custom_call.1']
  %s0 = inlined_call_operand.vmem [shape: f32[64,32], index: 0, kind: input, shape index: {}]
  %s1 = inlined_call_operand.vmem [shape: f32[8,8,1], index: 1, kind: input, shape index: {}]
  %s2 = inlined_call_operand.vmem [shape: f32[8,8,1], index: 2, kind: input, shape index: {}]
  %s3 = inlined_call_operand.vmem [shape: f32[3,32,32], index: 3, kind: input, shape index: {}]
  %s4 = inlined_call_operand.vmem [shape: f32[3,32,32], index: 4, kind: input, shape index: {}]
  %s5 = inlined_call_operand.vmem [shape: f32[3,1,32], index: 5, kind: input, shape index: {}]
  %s6 = inlined_call_operand.vmem [shape: f32[1,32], index: 6, kind: input, shape index: {}]
  %s7 = inlined_call_operand.<no memory space> [shape: f32[1,1], index: 7, kind: input, shape index: {}]
  %s8 = inlined_call_operand.hbm [shape: f32[8,32], index: 8, kind: output, shape index: {}]
  %s9 = sld [smem:[#allocation0]]
  $region42: #{tpu_custom_call.1} parent=0
    _
  %s11 = ssub.s32 1, %s9
  %s12 = scalar_select 0, %s11, %s9
  %v13 = vstv %s7
  %14 = vst [vmem:[#allocation2] sm:$0x1] %v13
  $region1: #{tpu_custom_call.1} parent=0
    #allocation3 [shape = 'u8[4096]{0}', space=vmem, size = 0x1000, scoped, tag = 'output window, operand 0, single buffered']
    #allocation4 [shape = 's32[1]{0}', space=sflag, size = 0x4, scoped, tag = 'scoped memory for tpu_custom_call.1']
    %15 = vsyncpa [#allocation4], 0
    // Predicated region
    $region2: #{tpu_custom_call.1} parent=1 // pred_check
      _
    $region3: #{tpu_custom_call.1} parent=1 // pred_check_branch
      %17 = sbr.rel (0) target = $region5
    $region4: #{tpu_custom_call.1} parent=1 // pred_region
      _
    $region5: #{tpu_custom_call.1} parent=1 // pred_fallthru
      _
    // Predicated region
    $region6: #{tpu_custom_call.1} parent=1 // pred_check
      _
    $region7: #{tpu_custom_call.1} parent=1 // pred_check_branch
      %19 = sbr.rel (0) target = $region9
    $region8: #{tpu_custom_call.1} parent=1 // pred_region
      _
    $region9: #{tpu_custom_call.1} parent=1 // pred_fallthru
      _
    // Predicated region
    $region10: #{tpu_custom_call.1} parent=1 // pred_check
      _
    $region11: #{tpu_custom_call.1} parent=1 // pred_check_branch
      %21 = sbr.rel (0) target = $region13
    $region12: #{tpu_custom_call.1} parent=1 // pred_region
      _
    $region13: #{tpu_custom_call.1} parent=1 // pred_fallthru
      _
    // Predicated region
    $region14: #{tpu_custom_call.1} parent=1 // pred_check
      _
    $region15: #{tpu_custom_call.1} parent=1 // pred_check_branch
      %23 = sbr.rel (0) target = $region17
    $region16: #{tpu_custom_call.1} parent=1 // pred_region
      _
    $region17: #{tpu_custom_call.1} parent=1 // pred_fallthru
      _
    // Predicated region
    $region18: #{tpu_custom_call.1} parent=1 // pred_check
      _
    $region19: #{tpu_custom_call.1} parent=1 // pred_check_branch
      %25 = sbr.rel (0) target = $region21
    $region20: #{tpu_custom_call.1} parent=1 // pred_region
      _
    $region21: #{tpu_custom_call.1} parent=1 // pred_fallthru
      _
    // Predicated region
    $region22: #{tpu_custom_call.1} parent=1 // pred_check
      _
    $region23: #{tpu_custom_call.1} parent=1 // pred_check_branch
      %27 = sbr.rel (0) target = $region25
    $region24: #{tpu_custom_call.1} parent=1 // pred_region
      _
    $region25: #{tpu_custom_call.1} parent=1 // pred_fallthru
      _
    // Predicated region
    $region26: #{tpu_custom_call.1} parent=1 // pred_check
      _
    $region27: #{tpu_custom_call.1} parent=1 // pred_check_branch
      %29 = sbr.rel (0) target = $region29
    $region28: #{tpu_custom_call.1} parent=1 // pred_region
      _
    $region29: #{tpu_custom_call.1} parent=1 // pred_fallthru
      _
    // Predicated region
    $region30: #{tpu_custom_call.1} parent=1 // pred_check
      _
    $region31: #{tpu_custom_call.1} parent=1 // pred_check_branch
      %31 = sbr.rel (0) target = $region33
    $region32: #{tpu_custom_call.1} parent=1 // pred_region
      _
    $region33: #{tpu_custom_call.1} parent=1 // pred_fallthru
      _
    %v32 = vld [vmem:[%s0] sm:$0xff]
    %v33 = vld [vmem:[%s0 + $0x8] sm:$0xff]
    %v34 = vld [vmem:[%s0 + $0x10] sm:$0xff]
    %v35 = vld [vmem:[%s0 + $0x18] sm:$0xff]
    %v36 = vld [vmem:[%s0 + $0x20] sm:$0xff]
    %v37 = vld [vmem:[%s0 + $0x28] sm:$0xff]
    %v38 = vld [vmem:[%s0 + $0x30] sm:$0xff]
    %v39 = vld [vmem:[%s0 + $0x38] sm:$0xff]
    %v40 = vld [vmem:[%s3] sm:$0xff]
    %v41 = vld [vmem:[%s3 + $0x8] sm:$0xff]
    %v42 = vld [vmem:[%s3 + $0x10] sm:$0xff]
    %v43 = vld [vmem:[%s3 + $0x18] sm:$0xff]
    %v44 = vld [vmem:[%s5] sm:$0x1]
    %v46 = vlaneseq
    %v47 = vshrl.u32 %v46, 7
    %v48 = vsub.s32 0, %v47
    %v49 = vrot.slane %v44, %v48
    %vm51 = vcmask 261120
    %v53 = vsel %vm51, %v32, 0
    %v56 = vsel %vm51, %v33, 0
    %v59 = vsel %vm51, %v34, 0
    %v62 = vsel %vm51, %v35, 0
    %v65 = vsel %vm51, %v36, 0
    %v68 = vsel %vm51, %v37, 0
    %v71 = vsel %vm51, %v38, 0
    %v74 = vsel %vm51, %v39, 0
    %76 = vmatprep.subr.mxu0 0.0
    %77 = vmatpush1.msra.mxu0 %v40
    %78 = vmatprep.subr.mxu0 0.0
    %79 = vmatpush1.msra.mxu0 %v41
    %80 = vmatprep.subr.mxu0 0.0
    %81 = vmatpush1.msra.mxu0 %v42
    %82 = vmatprep.subr.mxu0 0.0
    %83 = vmatpush1.msra.mxu0 %v43
    %84 = vmatprep.subr.mxu0 0.0
    %85 = vmatpush1.msra.mxu0 0.0
    %86 = vmatprep.subr.mxu0 0.0
    %87 = vmatpush1.msra.mxu0 0.0
    %88 = vmatprep.subr.mxu0 0.0
    %89 = vmatpush1.msra.mxu0 0.0
    %90 = vmatprep.subr.mxu0 0.0
    %91 = vmatpush1.msra.mxu0 0.0
    %92 = vmatprep.subr.mxu0 0.0
    %93 = vmatpush1.msra.mxu0 0.0
    %94 = vmatprep.subr.mxu0 0.0
    %95 = vmatpush1.msra.mxu0 0.0
    %96 = vmatprep.subr.mxu0 0.0
    %97 = vmatpush1.msra.mxu0 0.0
    %98 = vmatprep.subr.mxu0 0.0
    %99 = vmatpush1.msra.mxu0 0.0
    %100 = vmatprep.subr.mxu0 0.0
    %101 = vmatpush1.msra.mxu0 0.0
    %102 = vmatprep.subr.mxu0 0.0
    %103 = vmatpush1.msra.mxu0 0.0
    %104 = vmatprep.subr.mxu0 0.0
    %105 = vmatpush1.msra.mxu0 0.0
    %106 = vmatprep.subr.mxu0 0.0
    %107 = vmatpush1.msra.mxu0 0.0
    %108 = vmatprep.subr.mxu0 0.0
    %109 = vmatpush1.msra.mxu0 0.0
    %110 = vmatprep.subr.mxu0 0.0
    %111 = vmatpush1.msra.mxu0 0.0
    %112 = vmatprep.subr.mxu0 0.0
    %113 = vmatpush1.msra.mxu0 0.0
    %114 = vmatprep.subr.mxu0 0.0
    %115 = vmatpush1.msra.mxu0 0.0
    %116 = vmatprep.subr.mxu0 0.0
    %117 = vmatpush1.msra.mxu0 0.0
    %118 = vmatprep.subr.mxu0 0.0
    %119 = vmatpush1.msra.mxu0 0.0
    %120 = vmatprep.subr.mxu0 0.0
    %121 = vmatpush1.msra.mxu0 0.0
    %122 = vmatprep.subr.mxu0 0.0
    %123 = vmatpush1.msra.mxu0 0.0
    %124 = vmatprep.subr.mxu0 0.0
    %125 = vmatpush1.msra.mxu0 0.0
    %126 = vmatprep.subr.mxu0 0.0
    %127 = vmatpush1.msra.mxu0 0.0
    %128 = vmatprep.subr.mxu0 0.0
    %129 = vmatpush1.msra.mxu0 0.0
    %130 = vmatprep.subr.mxu0 0.0
    %131 = vmatpush1.msra.mxu0 0.0
    %132 = vmatprep.subr.mxu0 0.0
    %133 = vmatpush1.msra.mxu0 0.0
    %134 = vmatprep.subr.mxu0 0.0
    %135 = vmatpush1.msra.mxu0 0.0
    %136 = vmatprep.subr.mxu0 0.0
    %137 = vmatpush1.msra.mxu0 0.0
    %138 = vmatprep.subr.mxu0 0.0
    %139 = vmatpush1.msra.mxu0 0.0
    %140 = vmatprep.mubr.f32.mxu0 0.0
    %141 = vmatmul.mubr.f32.gmra.mrb[0].mxu0 %v53
    %v142 = vpop.f32.mrb[0].mxu0
    %v143 = vadd.f32 %v49, %v142
    %v144 = vpop.f32.mrb[0].mxu0
    %145 = vmatprep.mubr.f32.mxu0 0.0
    %146 = vmatmul.mubr.f32.gmra.mrb[0].mxu0 %v56
    %v147 = vpop.f32.mrb[0].mxu0
    %v148 = vadd.f32 %v49, %v147
    %v149 = vpop.f32.mrb[0].mxu0
    %150 = vmatprep.mubr.f32.mxu0 0.0
    %151 = vmatmul.mubr.f32.gmra.mrb[0].mxu0 %v59
    %v152 = vpop.f32.mrb[0].mxu0
    %v153 = vadd.f32 %v49, %v152
    %v154 = vpop.f32.mrb[0].mxu0
    %155 = vmatprep.mubr.f32.mxu0 0.0
    %156 = vmatmul.mubr.f32.gmra.mrb[0].mxu0 %v62
    %v157 = vpop.f32.mrb[0].mxu0
    %v158 = vadd.f32 %v49, %v157
    %v159 = vpop.f32.mrb[0].mxu0
    %160 = vmatprep.mubr.f32.mxu0 0.0
    %161 = vmatmul.mubr.f32.gmra.mrb[0].mxu0 %v65
    %v162 = vpop.f32.mrb[0].mxu0
    %v163 = vadd.f32 %v49, %v162
    %v164 = vpop.f32.mrb[0].mxu0
    %165 = vmatprep.mubr.f32.mxu0 0.0
    %166 = vmatmul.mubr.f32.gmra.mrb[0].mxu0 %v68
    %v167 = vpop.f32.mrb[0].mxu0
    %v168 = vadd.f32 %v49, %v167
    %v169 = vpop.f32.mrb[0].mxu0
    %170 = vmatprep.mubr.f32.mxu0 0.0
    %171 = vmatmul.mubr.f32.gmra.mrb[0].mxu0 %v71
    %v172 = vpop.f32.mrb[0].mxu0
    %v173 = vadd.f32 %v49, %v172
    %v174 = vpop.f32.mrb[0].mxu0
    %175 = vmatprep.mubr.f32.mxu0 0.0
    %176 = vmatmul.mubr.f32.gmra.mrb[0].mxu0 %v74
    %v177 = vpop.f32.mrb[0].mxu0
    %v178 = vadd.f32 %v49, %v177
    %v179 = vpop.f32.mrb[0].mxu0
    %180 = vdwg.mxu0
    %s181 = scalar_lea.vmem %s3, 32
    %v182 = vld [vmem:[%s181] sm:$0xff]
    %v183 = vld [vmem:[%s181 + $0x8] sm:$0xff]
    %v184 = vld [vmem:[%s181 + $0x10] sm:$0xff]
    %v185 = vld [vmem:[%s181 + $0x18] sm:$0xff]
    %s186 = scalar_lea.vmem %s5, 1
    %v187 = vld [vmem:[%s186] sm:$0x1]
    %v189 = vlaneseq
    %v190 = vshrl.u32 %v189, 7
    %v191 = vsub.s32 0, %v190
    %v192 = vrot.slane %v187, %v191
    %194 = vmatprep.subr.mxu0 0.0
    %195 = vmatpush1.msra.mxu0 %v182
    %196 = vmatprep.subr.mxu0 0.0
    %197 = vmatpush1.msra.mxu0 %v183
    %198 = vmatprep.subr.mxu0 0.0
    %199 = vmatpush1.msra.mxu0 %v184
    %200 = vmatprep.subr.mxu0 0.0
    %201 = vmatpush1.msra.mxu0 %v185
    %202 = vmatprep.subr.mxu0 0.0
    %203 = vmatpush1.msra.mxu0 0.0
    %204 = vmatprep.subr.mxu0 0.0
    %205 = vmatpush1.msra.mxu0 0.0
    %206 = vmatprep.subr.mxu0 0.0
    %207 = vmatpush1.msra.mxu0 0.0
    %208 = vmatprep.subr.mxu0 0.0
    %209 = vmatpush1.msra.mxu0 0.0
    %210 = vmatprep.subr.mxu0 0.0
    %211 = vmatpush1.msra.mxu0 0.0
    %212 = vmatprep.subr.mxu0 0.0
    %213 = vmatpush1.msra.mxu0 0.0
    %214 = vmatprep.subr.mxu0 0.0
    %215 = vmatpush1.msra.mxu0 0.0
    %216 = vmatprep.subr.mxu0 0.0
    %217 = vmatpush1.msra.mxu0 0.0
    %218 = vmatprep.subr.mxu0 0.0
    %219 = vmatpush1.msra.mxu0 0.0
    %220 = vmatprep.subr.mxu0 0.0
    %221 = vmatpush1.msra.mxu0 0.0
    %222 = vmatprep.subr.mxu0 0.0
    %223 = vmatpush1.msra.mxu0 0.0
    %224 = vmatprep.subr.mxu0 0.0
    %225 = vmatpush1.msra.mxu0 0.0
    %226 = vmatprep.subr.mxu0 0.0
    %227 = vmatpush1.msra.mxu0 0.0
    %228 = vmatprep.subr.mxu0 0.0
    %229 = vmatpush1.msra.mxu0 0.0
    %230 = vmatprep.subr.mxu0 0.0
    %231 = vmatpush1.msra.mxu0 0.0
    %232 = vmatprep.subr.mxu0 0.0
    %233 = vmatpush1.msra.mxu0 0.0
    %234 = vmatprep.subr.mxu0 0.0
    %235 = vmatpush1.msra.mxu0 0.0
    %236 = vmatprep.subr.mxu0 0.0
    %237 = vmatpush1.msra.mxu0 0.0
    %238 = vmatprep.subr.mxu0 0.0
    %239 = vmatpush1.msra.mxu0 0.0
    %240 = vmatprep.subr.mxu0 0.0
    %241 = vmatpush1.msra.mxu0 0.0
    %242 = vmatprep.subr.mxu0 0.0
    %243 = vmatpush1.msra.mxu0 0.0
    %244 = vmatprep.subr.mxu0 0.0
    %245 = vmatpush1.msra.mxu0 0.0
    %246 = vmatprep.subr.mxu0 0.0
    %247 = vmatpush1.msra.mxu0 0.0
    %248 = vmatprep.subr.mxu0 0.0
    %249 = vmatpush1.msra.mxu0 0.0
    %250 = vmatprep.subr.mxu0 0.0
    %251 = vmatpush1.msra.mxu0 0.0
    %252 = vmatprep.subr.mxu0 0.0
    %253 = vmatpush1.msra.mxu0 0.0
    %254 = vmatprep.subr.mxu0 0.0
    %255 = vmatpush1.msra.mxu0 0.0
    %256 = vmatprep.subr.mxu0 0.0
    %257 = vmatpush1.msra.mxu0 0.0
    %258 = vmatprep.mubr.f32.mxu0 0.0
    %259 = vmatmul.mubr.f32.gmra.mrb[0].mxu0 %v53
    %v260 = vpop.f32.mrb[0].mxu0
    %v261 = vadd.f32 %v192, %v260
    %v262 = vpop.f32.mrb[0].mxu0
    %263 = vmatprep.mubr.f32.mxu0 0.0
    %264 = vmatmul.mubr.f32.gmra.mrb[0].mxu0 %v56
    %v265 = vpop.f32.mrb[0].mxu0
    %v266 = vadd.f32 %v192, %v265
    %v267 = vpop.f32.mrb[0].mxu0
    %268 = vmatprep.mubr.f32.mxu0 0.0
    %269 = vmatmul.mubr.f32.gmra.mrb[0].mxu0 %v59
    %v270 = vpop.f32.mrb[0].mxu0
    %v271 = vadd.f32 %v192, %v270
    %v272 = vpop.f32.mrb[0].mxu0
    %273 = vmatprep.mubr.f32.mxu0 0.0
    %274 = vmatmul.mubr.f32.gmra.mrb[0].mxu0 %v62
    %v275 = vpop.f32.mrb[0].mxu0
    %v276 = vadd.f32 %v192, %v275
    %v277 = vpop.f32.mrb[0].mxu0
    %278 = vmatprep.mubr.f32.mxu0 0.0
    %279 = vmatmul.mubr.f32.gmra.mrb[0].mxu0 %v65
    %v280 = vpop.f32.mrb[0].mxu0
    %v281 = vadd.f32 %v192, %v280
    %v282 = vpop.f32.mrb[0].mxu0
    %283 = vmatprep.mubr.f32.mxu0 0.0
    %284 = vmatmul.mubr.f32.gmra.mrb[0].mxu0 %v68
    %v285 = vpop.f32.mrb[0].mxu0
    %v286 = vadd.f32 %v192, %v285
    %v287 = vpop.f32.mrb[0].mxu0
    %288 = vmatprep.mubr.f32.mxu0 0.0
    %289 = vmatmul.mubr.f32.gmra.mrb[0].mxu0 %v71
    %v290 = vpop.f32.mrb[0].mxu0
    %v291 = vadd.f32 %v192, %v290
    %v292 = vpop.f32.mrb[0].mxu0
    %293 = vmatprep.mubr.f32.mxu0 0.0
    %294 = vmatmul.mubr.f32.gmra.mrb[0].mxu0 %v74
    %v295 = vpop.f32.mrb[0].mxu0
    %v296 = vadd.f32 %v192, %v295
    %v297 = vpop.f32.mrb[0].mxu0
    %298 = vdwg.mxu0
    %s299 = scalar_lea.vmem %s3, 64
    %v300 = vld [vmem:[%s299] sm:$0xff]
    %v301 = vld [vmem:[%s299 + $0x8] sm:$0xff]
    %v302 = vld [vmem:[%s299 + $0x10] sm:$0xff]
    %v303 = vld [vmem:[%s299 + $0x18] sm:$0xff]
    %s304 = scalar_lea.vmem %s5, 2
    %v305 = vld [vmem:[%s304] sm:$0x1]
    %v307 = vlaneseq
    %v308 = vshrl.u32 %v307, 7
    %v309 = vsub.s32 0, %v308
    %v310 = vrot.slane %v305, %v309
    %312 = vmatprep.subr.mxu0 0.0
    %313 = vmatpush1.msra.mxu0 %v300
    %314 = vmatprep.subr.mxu0 0.0
    %315 = vmatpush1.msra.mxu0 %v301
    %316 = vmatprep.subr.mxu0 0.0
    %317 = vmatpush1.msra.mxu0 %v302
    %318 = vmatprep.subr.mxu0 0.0
    %319 = vmatpush1.msra.mxu0 %v303
    %320 = vmatprep.subr.mxu0 0.0
    %321 = vmatpush1.msra.mxu0 0.0
    %322 = vmatprep.subr.mxu0 0.0
    %323 = vmatpush1.msra.mxu0 0.0
    %324 = vmatprep.subr.mxu0 0.0
    %325 = vmatpush1.msra.mxu0 0.0
    %326 = vmatprep.subr.mxu0 0.0
    %327 = vmatpush1.msra.mxu0 0.0
    %328 = vmatprep.subr.mxu0 0.0
    %329 = vmatpush1.msra.mxu0 0.0
    %330 = vmatprep.subr.mxu0 0.0
    %331 = vmatpush1.msra.mxu0 0.0
    %332 = vmatprep.subr.mxu0 0.0
    %333 = vmatpush1.msra.mxu0 0.0
    %334 = vmatprep.subr.mxu0 0.0
    %335 = vmatpush1.msra.mxu0 0.0
    %336 = vmatprep.subr.mxu0 0.0
    %337 = vmatpush1.msra.mxu0 0.0
    %338 = vmatprep.subr.mxu0 0.0
    %339 = vmatpush1.msra.mxu0 0.0
    %340 = vmatprep.subr.mxu0 0.0
    %341 = vmatpush1.msra.mxu0 0.0
    %342 = vmatprep.subr.mxu0 0.0
    %343 = vmatpush1.msra.mxu0 0.0
    %344 = vmatprep.subr.mxu0 0.0
    %345 = vmatpush1.msra.mxu0 0.0
    %346 = vmatprep.subr.mxu0 0.0
    %347 = vmatpush1.msra.mxu0 0.0
    %348 = vmatprep.subr.mxu0 0.0
    %349 = vmatpush1.msra.mxu0 0.0
    %350 = vmatprep.subr.mxu0 0.0
    %351 = vmatpush1.msra.mxu0 0.0
    %352 = vmatprep.subr.mxu0 0.0
    %353 = vmatpush1.msra.mxu0 0.0
    %354 = vmatprep.subr.mxu0 0.0
    %355 = vmatpush1.msra.mxu0 0.0
    %356 = vmatprep.subr.mxu0 0.0
    %357 = vmatpush1.msra.mxu0 0.0
    %358 = vmatprep.subr.mxu0 0.0
    %359 = vmatpush1.msra.mxu0 0.0
    %360 = vmatprep.subr.mxu0 0.0
    %361 = vmatpush1.msra.mxu0 0.0
    %362 = vmatprep.subr.mxu0 0.0
    %363 = vmatpush1.msra.mxu0 0.0
    %364 = vmatprep.subr.mxu0 0.0
    %365 = vmatpush1.msra.mxu0 0.0
    %366 = vmatprep.subr.mxu0 0.0
    %367 = vmatpush1.msra.mxu0 0.0
    %368 = vmatprep.subr.mxu0 0.0
    %369 = vmatpush1.msra.mxu0 0.0
    %370 = vmatprep.subr.mxu0 0.0
    %371 = vmatpush1.msra.mxu0 0.0
    %372 = vmatprep.subr.mxu0 0.0
    %373 = vmatpush1.msra.mxu0 0.0
    %374 = vmatprep.subr.mxu0 0.0
    %375 = vmatpush1.msra.mxu0 0.0
    %376 = vmatprep.mubr.f32.mxu0 0.0
    %377 = vmatmul.mubr.f32.gmra.mrb[0].mxu0 %v53
    %v378 = vpop.f32.mrb[0].mxu0
    %v379 = vadd.f32 %v310, %v378
    %v380 = vpop.f32.mrb[0].mxu0
    %381 = vmatprep.mubr.f32.mxu0 0.0
    %382 = vmatmul.mubr.f32.gmra.mrb[0].mxu0 %v56
    %v383 = vpop.f32.mrb[0].mxu0
    %v384 = vadd.f32 %v310, %v383
    %v385 = vpop.f32.mrb[0].mxu0
    %386 = vmatprep.mubr.f32.mxu0 0.0
    %387 = vmatmul.mubr.f32.gmra.mrb[0].mxu0 %v59
    %v388 = vpop.f32.mrb[0].mxu0
    %v389 = vadd.f32 %v310, %v388
    %v390 = vpop.f32.mrb[0].mxu0
    %391 = vmatprep.mubr.f32.mxu0 0.0
    %392 = vmatmul.mubr.f32.gmra.mrb[0].mxu0 %v62
    %v393 = vpop.f32.mrb[0].mxu0
    %v394 = vadd.f32 %v310, %v393
    %v395 = vpop.f32.mrb[0].mxu0
    %396 = vmatprep.mubr.f32.mxu0 0.0
    %397 = vmatmul.mubr.f32.gmra.mrb[0].mxu0 %v65
    %v398 = vpop.f32.mrb[0].mxu0
    %v399 = vadd.f32 %v310, %v398
    %v400 = vpop.f32.mrb[0].mxu0
    %401 = vmatprep.mubr.f32.mxu0 0.0
    %402 = vmatmul.mubr.f32.gmra.mrb[0].mxu0 %v68
    %v403 = vpop.f32.mrb[0].mxu0
    %v404 = vadd.f32 %v310, %v403
    %v405 = vpop.f32.mrb[0].mxu0
    %406 = vmatprep.mubr.f32.mxu0 0.0
    %407 = vmatmul.mubr.f32.gmra.mrb[0].mxu0 %v71
    %v408 = vpop.f32.mrb[0].mxu0
    %v409 = vadd.f32 %v310, %v408
    %v410 = vpop.f32.mrb[0].mxu0
    %411 = vmatprep.mubr.f32.mxu0 0.0
    %412 = vmatmul.mubr.f32.gmra.mrb[0].mxu0 %v74
    %v413 = vpop.f32.mrb[0].mxu0
    %v414 = vadd.f32 %v310, %v413
    %v415 = vpop.f32.mrb[0].mxu0
    %416 = vdwg.mxu0
    %v417 = vld [vmem:[%s4] sm:$0xff]
    %v418 = vld [vmem:[%s4 + $0x8] sm:$0xff]
    %v419 = vld [vmem:[%s4 + $0x10] sm:$0xff]
    %v420 = vld [vmem:[%s4 + $0x18] sm:$0xff]
    %s421 = scalar_lea.vmem %s4, 32
    %v422 = vld [vmem:[%s421] sm:$0xff]
    %v423 = vld [vmem:[%s421 + $0x8] sm:$0xff]
    %v424 = vld [vmem:[%s421 + $0x10] sm:$0xff]
    %v425 = vld [vmem:[%s421 + $0x18] sm:$0xff]
    %s426 = scalar_lea.vmem %s4, 64
    %v427 = vld [vmem:[%s426] sm:$0xff]
    %v428 = vld [vmem:[%s426 + $0x8] sm:$0xff]
    %v429 = vld [vmem:[%s426 + $0x10] sm:$0xff]
    %v430 = vld [vmem:[%s426 + $0x18] sm:$0xff]
    %v431 = vld [vmem:[%s6] sm:$0x1]
    %v433 = vsel %vm51, 0.0, 0
    %435 = vmatprep.subr.mxu0 0.0
    %436 = vmatpush1.msra.mxu0 %v417
    %437 = vmatprep.subr.mxu0 0.0
    %438 = vmatpush1.msra.mxu0 %v418
    %439 = vmatprep.subr.mxu0 0.0
    %440 = vmatpush1.msra.mxu0 %v419
    %441 = vmatprep.subr.mxu0 0.0
    %442 = vmatpush1.msra.mxu0 %v420
    %443 = vmatprep.subr.mxu0 0.0
    %444 = vmatpush1.msra.mxu0 0.0
    %445 = vmatprep.subr.mxu0 0.0
    %446 = vmatpush1.msra.mxu0 0.0
    %447 = vmatprep.subr.mxu0 0.0
    %448 = vmatpush1.msra.mxu0 0.0
    %449 = vmatprep.subr.mxu0 0.0
    %450 = vmatpush1.msra.mxu0 0.0
    %451 = vmatprep.subr.mxu0 0.0
    %452 = vmatpush1.msra.mxu0 0.0
    %453 = vmatprep.subr.mxu0 0.0
    %454 = vmatpush1.msra.mxu0 0.0
    %455 = vmatprep.subr.mxu0 0.0
    %456 = vmatpush1.msra.mxu0 0.0
    %457 = vmatprep.subr.mxu0 0.0
    %458 = vmatpush1.msra.mxu0 0.0
    %459 = vmatprep.subr.mxu0 0.0
    %460 = vmatpush1.msra.mxu0 0.0
    %461 = vmatprep.subr.mxu0 0.0
    %462 = vmatpush1.msra.mxu0 0.0
    %463 = vmatprep.subr.mxu0 0.0
    %464 = vmatpush1.msra.mxu0 0.0
    %465 = vmatprep.subr.mxu0 0.0
    %466 = vmatpush1.msra.mxu0 0.0
    %467 = vmatprep.subr.mxu0 0.0
    %468 = vmatpush1.msra.mxu0 0.0
    %469 = vmatprep.subr.mxu0 0.0
    %470 = vmatpush1.msra.mxu0 0.0
    %471 = vmatprep.subr.mxu0 0.0
    %472 = vmatpush1.msra.mxu0 0.0
    %473 = vmatprep.subr.mxu0 0.0
    %474 = vmatpush1.msra.mxu0 0.0
    %475 = vmatprep.subr.mxu0 0.0
    %476 = vmatpush1.msra.mxu0 0.0
    %477 = vmatprep.subr.mxu0 0.0
    %478 = vmatpush1.msra.mxu0 0.0
    %479 = vmatprep.subr.mxu0 0.0
    %480 = vmatpush1.msra.mxu0 0.0
    %481 = vmatprep.subr.mxu0 0.0
    %482 = vmatpush1.msra.mxu0 0.0
    %483 = vmatprep.subr.mxu0 0.0
    %484 = vmatpush1.msra.mxu0 0.0
    %485 = vmatprep.subr.mxu0 0.0
    %486 = vmatpush1.msra.mxu0 0.0
    %487 = vmatprep.subr.mxu0 0.0
    %488 = vmatpush1.msra.mxu0 0.0
    %489 = vmatprep.subr.mxu0 0.0
    %490 = vmatpush1.msra.mxu0 0.0
    %491 = vmatprep.subr.mxu0 0.0
    %492 = vmatpush1.msra.mxu0 0.0
    %493 = vmatprep.subr.mxu0 0.0
    %494 = vmatpush1.msra.mxu0 0.0
    %495 = vmatprep.subr.mxu0 0.0
    %496 = vmatpush1.msra.mxu0 0.0
    %497 = vmatprep.subr.mxu0 0.0
    %498 = vmatpush1.msra.mxu0 0.0
    %499 = vmatprep.mubr.f32.mxu0 0.0
    %500 = vmatmul.mubr.f32.gmra.mrb[0].mxu0 %v433
    %v501 = vpop.f32.mrb[0].mxu0
    %v502 = vadd.f32 0.0, %v501
    %v503 = vpop.f32.mrb[0].mxu0
    %504 = vdwg.mxu0
    %505 = vmatprep.subr.mxu0 0.0
    %506 = vmatpush1.msra.mxu0 %v422
    %507 = vmatprep.subr.mxu0 0.0
    %508 = vmatpush1.msra.mxu0 %v423
    %509 = vmatprep.subr.mxu0 0.0
    %510 = vmatpush1.msra.mxu0 %v424
    %511 = vmatprep.subr.mxu0 0.0
    %512 = vmatpush1.msra.mxu0 %v425
    %513 = vmatprep.subr.mxu0 0.0
    %514 = vmatpush1.msra.mxu0 0.0
    %515 = vmatprep.subr.mxu0 0.0
    %516 = vmatpush1.msra.mxu0 0.0
    %517 = vmatprep.subr.mxu0 0.0
    %518 = vmatpush1.msra.mxu0 0.0
    %519 = vmatprep.subr.mxu0 0.0
    %520 = vmatpush1.msra.mxu0 0.0
    %521 = vmatprep.subr.mxu0 0.0
    %522 = vmatpush1.msra.mxu0 0.0
    %523 = vmatprep.subr.mxu0 0.0
    %524 = vmatpush1.msra.mxu0 0.0
    %525 = vmatprep.subr.mxu0 0.0
    %526 = vmatpush1.msra.mxu0 0.0
    %527 = vmatprep.subr.mxu0 0.0
    %528 = vmatpush1.msra.mxu0 0.0
    %529 = vmatprep.subr.mxu0 0.0
    %530 = vmatpush1.msra.mxu0 0.0
    %531 = vmatprep.subr.mxu0 0.0
    %532 = vmatpush1.msra.mxu0 0.0
    %533 = vmatprep.subr.mxu0 0.0
    %534 = vmatpush1.msra.mxu0 0.0
    %535 = vmatprep.subr.mxu0 0.0
    %536 = vmatpush1.msra.mxu0 0.0
    %537 = vmatprep.subr.mxu0 0.0
    %538 = vmatpush1.msra.mxu0 0.0
    %539 = vmatprep.subr.mxu0 0.0
    %540 = vmatpush1.msra.mxu0 0.0
    %541 = vmatprep.subr.mxu0 0.0
    %542 = vmatpush1.msra.mxu0 0.0
    %543 = vmatprep.subr.mxu0 0.0
    %544 = vmatpush1.msra.mxu0 0.0
    %545 = vmatprep.subr.mxu0 0.0
    %546 = vmatpush1.msra.mxu0 0.0
    %547 = vmatprep.subr.mxu0 0.0
    %548 = vmatpush1.msra.mxu0 0.0
    %549 = vmatprep.subr.mxu0 0.0
    %550 = vmatpush1.msra.mxu0 0.0
    %551 = vmatprep.subr.mxu0 0.0
    %552 = vmatpush1.msra.mxu0 0.0
    %553 = vmatprep.subr.mxu0 0.0
    %554 = vmatpush1.msra.mxu0 0.0
    %555 = vmatprep.subr.mxu0 0.0
    %556 = vmatpush1.msra.mxu0 0.0
    %557 = vmatprep.subr.mxu0 0.0
    %558 = vmatpush1.msra.mxu0 0.0
    %559 = vmatprep.subr.mxu0 0.0
    %560 = vmatpush1.msra.mxu0 0.0
    %561 = vmatprep.subr.mxu0 0.0
    %562 = vmatpush1.msra.mxu0 0.0
    %563 = vmatprep.subr.mxu0 0.0
    %564 = vmatpush1.msra.mxu0 0.0
    %565 = vmatprep.subr.mxu0 0.0
    %566 = vmatpush1.msra.mxu0 0.0
    %567 = vmatprep.subr.mxu0 0.0
    %568 = vmatpush1.msra.mxu0 0.0
    %569 = vmatprep.mubr.f32.mxu0 0.0
    %570 = vmatmul.mubr.f32.gmra.mrb[0].mxu0 %v433
    %v571 = vpop.f32.mrb[0].mxu0
    %v572 = vadd.f32 0.0, %v571
    %v573 = vpop.f32.mrb[0].mxu0
    %574 = vdwg.mxu0
    %v576 = vlaneseq
    %v577 = vshrl.u32 %v576, 7
    %v578 = vsub.s32 0, %v577
    %v579 = vrot.slane %v431, %v578
    %581 = vmatprep.subr.mxu0 0.0
    %582 = vmatpush1.msra.mxu0 %v427
    %583 = vmatprep.subr.mxu0 0.0
    %584 = vmatpush1.msra.mxu0 %v428
    %585 = vmatprep.subr.mxu0 0.0
    %586 = vmatpush1.msra.mxu0 %v429
    %587 = vmatprep.subr.mxu0 0.0
    %588 = vmatpush1.msra.mxu0 %v430
    %589 = vmatprep.subr.mxu0 0.0
    %590 = vmatpush1.msra.mxu0 0.0
    %591 = vmatprep.subr.mxu0 0.0
    %592 = vmatpush1.msra.mxu0 0.0
    %593 = vmatprep.subr.mxu0 0.0
    %594 = vmatpush1.msra.mxu0 0.0
    %595 = vmatprep.subr.mxu0 0.0
    %596 = vmatpush1.msra.mxu0 0.0
    %597 = vmatprep.subr.mxu0 0.0
    %598 = vmatpush1.msra.mxu0 0.0
    %599 = vmatprep.subr.mxu0 0.0
    %600 = vmatpush1.msra.mxu0 0.0
    %601 = vmatprep.subr.mxu0 0.0
    %602 = vmatpush1.msra.mxu0 0.0
    %603 = vmatprep.subr.mxu0 0.0
    %604 = vmatpush1.msra.mxu0 0.0
    %605 = vmatprep.subr.mxu0 0.0
    %606 = vmatpush1.msra.mxu0 0.0
    %607 = vmatprep.subr.mxu0 0.0
    %608 = vmatpush1.msra.mxu0 0.0
    %609 = vmatprep.subr.mxu0 0.0
    %610 = vmatpush1.msra.mxu0 0.0
    %611 = vmatprep.subr.mxu0 0.0
    %612 = vmatpush1.msra.mxu0 0.0
    %613 = vmatprep.subr.mxu0 0.0
    %614 = vmatpush1.msra.mxu0 0.0
    %615 = vmatprep.subr.mxu0 0.0
    %616 = vmatpush1.msra.mxu0 0.0
    %617 = vmatprep.subr.mxu0 0.0
    %618 = vmatpush1.msra.mxu0 0.0
    %619 = vmatprep.subr.mxu0 0.0
    %620 = vmatpush1.msra.mxu0 0.0
    %621 = vmatprep.subr.mxu0 0.0
    %622 = vmatpush1.msra.mxu0 0.0
    %623 = vmatprep.subr.mxu0 0.0
    %624 = vmatpush1.msra.mxu0 0.0
    %625 = vmatprep.subr.mxu0 0.0
    %626 = vmatpush1.msra.mxu0 0.0
    %627 = vmatprep.subr.mxu0 0.0
    %628 = vmatpush1.msra.mxu0 0.0
    %629 = vmatprep.subr.mxu0 0.0
    %630 = vmatpush1.msra.mxu0 0.0
    %631 = vmatprep.subr.mxu0 0.0
    %632 = vmatpush1.msra.mxu0 0.0
    %633 = vmatprep.subr.mxu0 0.0
    %634 = vmatpush1.msra.mxu0 0.0
    %635 = vmatprep.subr.mxu0 0.0
    %636 = vmatpush1.msra.mxu0 0.0
    %637 = vmatprep.subr.mxu0 0.0
    %638 = vmatpush1.msra.mxu0 0.0
    %639 = vmatprep.subr.mxu0 0.0
    %640 = vmatpush1.msra.mxu0 0.0
    %641 = vmatprep.subr.mxu0 0.0
    %642 = vmatpush1.msra.mxu0 0.0
    %643 = vmatprep.subr.mxu0 0.0
    %644 = vmatpush1.msra.mxu0 0.0
    %645 = vmatprep.mubr.f32.mxu0 0.0
    %646 = vmatmul.mubr.f32.gmra.mrb[0].mxu0 %v433
    %v647 = vpop.f32.mrb[0].mxu0
    %v648 = vadd.f32 %v579, %v647
    %v649 = vpop.f32.mrb[0].mxu0
    %650 = vdwg.mxu0
    %v651 = vadd.f32 %v143, %v502
    %v652 = vsub.f32 0.0, %v651
    %v653 = vmul.f32 %v652, 1.442695
    %v654 = vpow.pop %v653
    %v655 = vadd.f32 %v654, 1.0
    %v656 = vrcp.pop %v655
    %v657 = vmul.f32 1.0, %v656
    %v658 = vadd.f32 %v261, %v572
    %v659 = vsub.f32 0.0, %v658
    %v660 = vmul.f32 %v659, 1.442695
    %v661 = vpow.pop %v660
    %v662 = vadd.f32 %v661, 1.0
    %v663 = vrcp.pop %v662
    %v664 = vmul.f32 1.0, %v663
    %v665 = vmul.f32 %v657, %v648
    %v666 = vadd.f32 %v379, %v665
    %v667 = vtanh.pop %v666
    %v668 = vsub.f32 0.0, %v667
    %v669 = vmul.f32 %v664, %v668
    %v670 = vadd.f32 %v667, %v669
    %v671 = vld [vmem:[%s1] sm:$0xff]
    %v672 = vld [vmem:[%s2] sm:$0xff]
    %674 = vset.pattern.permute.xlu0 0
    %675 = vperm.xlu0 %674, %v671
    %v676 = vpop.permute.xlu0 %675
    %v678 = vmul.f32 %v676, %v670
    %v679 = vadd.f32 %v678, 0.0
    %681 = vset.pattern.permute.xlu0 0
    %682 = vperm.xlu0 %681, %v672
    %v683 = vpop.permute.xlu0 %682
    %v685 = vmul.f32 %v683, %v670
    %v686 = vadd.f32 %v685, 0.0
    %v688 = vsel %vm51, %v679, 0
    %690 = vmatprep.subr.mxu0 0.0
    %691 = vmatpush1.msra.mxu0 %v417
    %692 = vmatprep.subr.mxu0 0.0
    %693 = vmatpush1.msra.mxu0 %v418
    %694 = vmatprep.subr.mxu0 0.0
    %695 = vmatpush1.msra.mxu0 %v419
    %696 = vmatprep.subr.mxu0 0.0
    %697 = vmatpush1.msra.mxu0 %v420
    %698 = vmatprep.subr.mxu0 0.0
    %699 = vmatpush1.msra.mxu0 0.0
    %700 = vmatprep.subr.mxu0 0.0
    %701 = vmatpush1.msra.mxu0 0.0
    %702 = vmatprep.subr.mxu0 0.0
    %703 = vmatpush1.msra.mxu0 0.0
    %704 = vmatprep.subr.mxu0 0.0
    %705 = vmatpush1.msra.mxu0 0.0
    %706 = vmatprep.subr.mxu0 0.0
    %707 = vmatpush1.msra.mxu0 0.0
    %708 = vmatprep.subr.mxu0 0.0
    %709 = vmatpush1.msra.mxu0 0.0
    %710 = vmatprep.subr.mxu0 0.0
    %711 = vmatpush1.msra.mxu0 0.0
    %712 = vmatprep.subr.mxu0 0.0
    %713 = vmatpush1.msra.mxu0 0.0
    %714 = vmatprep.subr.mxu0 0.0
    %715 = vmatpush1.msra.mxu0 0.0
    %716 = vmatprep.subr.mxu0 0.0
    %717 = vmatpush1.msra.mxu0 0.0
    %718 = vmatprep.subr.mxu0 0.0
    %719 = vmatpush1.msra.mxu0 0.0
    %720 = vmatprep.subr.mxu0 0.0
    %721 = vmatpush1.msra.mxu0 0.0
    %722 = vmatprep.subr.mxu0 0.0
    %723 = vmatpush1.msra.mxu0 0.0
    %724 = vmatprep.subr.mxu0 0.0
    %725 = vmatpush1.msra.mxu0 0.0
    %726 = vmatprep.subr.mxu0 0.0
    %727 = vmatpush1.msra.mxu0 0.0
    %728 = vmatprep.subr.mxu0 0.0
    %729 = vmatpush1.msra.mxu0 0.0
    %730 = vmatprep.subr.mxu0 0.0
    %731 = vmatpush1.msra.mxu0 0.0
    %732 = vmatprep.subr.mxu0 0.0
    %733 = vmatpush1.msra.mxu0 0.0
    %734 = vmatprep.subr.mxu0 0.0
    %735 = vmatpush1.msra.mxu0 0.0
    %736 = vmatprep.subr.mxu0 0.0
    %737 = vmatpush1.msra.mxu0 0.0
    %738 = vmatprep.subr.mxu0 0.0
    %739 = vmatpush1.msra.mxu0 0.0
    %740 = vmatprep.subr.mxu0 0.0
    %741 = vmatpush1.msra.mxu0 0.0
    %742 = vmatprep.subr.mxu0 0.0
    %743 = vmatpush1.msra.mxu0 0.0
    %744 = vmatprep.subr.mxu0 0.0
    %745 = vmatpush1.msra.mxu0 0.0
    %746 = vmatprep.subr.mxu0 0.0
    %747 = vmatpush1.msra.mxu0 0.0
    %748 = vmatprep.subr.mxu0 0.0
    %749 = vmatpush1.msra.mxu0 0.0
    %750 = vmatprep.subr.mxu0 0.0
    %751 = vmatpush1.msra.mxu0 0.0
    %752 = vmatprep.subr.mxu0 0.0
    %753 = vmatpush1.msra.mxu0 0.0
    %754 = vmatprep.mubr.f32.mxu0 0.0
    %755 = vmatmul.mubr.f32.gmra.mrb[0].mxu0 %v688
    %v756 = vpop.f32.mrb[0].mxu0
    %v757 = vadd.f32 0.0, %v756
    %v758 = vpop.f32.mrb[0].mxu0
    %759 = vdwg.mxu0
    %760 = vmatprep.subr.mxu0 0.0
    %761 = vmatpush1.msra.mxu0 %v422
    %762 = vmatprep.subr.mxu0 0.0
    %763 = vmatpush1.msra.mxu0 %v423
    %764 = vmatprep.subr.mxu0 0.0
    %765 = vmatpush1.msra.mxu0 %v424
    %766 = vmatprep.subr.mxu0 0.0
    %767 = vmatpush1.msra.mxu0 %v425
    %768 = vmatprep.subr.mxu0 0.0
    %769 = vmatpush1.msra.mxu0 0.0
    %770 = vmatprep.subr.mxu0 0.0
    %771 = vmatpush1.msra.mxu0 0.0
    %772 = vmatprep.subr.mxu0 0.0
    %773 = vmatpush1.msra.mxu0 0.0
    %774 = vmatprep.subr.mxu0 0.0
    %775 = vmatpush1.msra.mxu0 0.0
    %776 = vmatprep.subr.mxu0 0.0
    %777 = vmatpush1.msra.mxu0 0.0
    %778 = vmatprep.subr.mxu0 0.0
    %779 = vmatpush1.msra.mxu0 0.0
    %780 = vmatprep.subr.mxu0 0.0
    %781 = vmatpush1.msra.mxu0 0.0
    %782 = vmatprep.subr.mxu0 0.0
    %783 = vmatpush1.msra.mxu0 0.0
    %784 = vmatprep.subr.mxu0 0.0
    %785 = vmatpush1.msra.mxu0 0.0
    %786 = vmatprep.subr.mxu0 0.0
    %787 = vmatpush1.msra.mxu0 0.0
    %788 = vmatprep.subr.mxu0 0.0
    %789 = vmatpush1.msra.mxu0 0.0
    %790 = vmatprep.subr.mxu0 0.0
    %791 = vmatpush1.msra.mxu0 0.0
    %792 = vmatprep.subr.mxu0 0.0
    %793 = vmatpush1.msra.mxu0 0.0
    %794 = vmatprep.subr.mxu0 0.0
    %795 = vmatpush1.msra.mxu0 0.0
    %796 = vmatprep.subr.mxu0 0.0
    %797 = vmatpush1.msra.mxu0 0.0
    %798 = vmatprep.subr.mxu0 0.0
    %799 = vmatpush1.msra.mxu0 0.0
    %800 = vmatprep.subr.mxu0 0.0
    %801 = vmatpush1.msra.mxu0 0.0
    %802 = vmatprep.subr.mxu0 0.0
    %803 = vmatpush1.msra.mxu0 0.0
    %804 = vmatprep.subr.mxu0 0.0
    %805 = vmatpush1.msra.mxu0 0.0
    %806 = vmatprep.subr.mxu0 0.0
    %807 = vmatpush1.msra.mxu0 0.0
    %808 = vmatprep.subr.mxu0 0.0
    %809 = vmatpush1.msra.mxu0 0.0
    %810 = vmatprep.subr.mxu0 0.0
    %811 = vmatpush1.msra.mxu0 0.0
    %812 = vmatprep.subr.mxu0 0.0
    %813 = vmatpush1.msra.mxu0 0.0
    %814 = vmatprep.subr.mxu0 0.0
    %815 = vmatpush1.msra.mxu0 0.0
    %816 = vmatprep.subr.mxu0 0.0
    %817 = vmatpush1.msra.mxu0 0.0
    %818 = vmatprep.subr.mxu0 0.0
    %819 = vmatpush1.msra.mxu0 0.0
    %820 = vmatprep.subr.mxu0 0.0
    %821 = vmatpush1.msra.mxu0 0.0
    %822 = vmatprep.subr.mxu0 0.0
    %823 = vmatpush1.msra.mxu0 0.0
    %824 = vmatprep.mubr.f32.mxu0 0.0
    %825 = vmatmul.mubr.f32.gmra.mrb[0].mxu0 %v688
    %v826 = vpop.f32.mrb[0].mxu0
    %v827 = vadd.f32 0.0, %v826
    %v828 = vpop.f32.mrb[0].mxu0
    %829 = vdwg.mxu0
    %830 = vmatprep.subr.mxu0 0.0
    %831 = vmatpush1.msra.mxu0 %v427
    %832 = vmatprep.subr.mxu0 0.0
    %833 = vmatpush1.msra.mxu0 %v428
    %834 = vmatprep.subr.mxu0 0.0
    %835 = vmatpush1.msra.mxu0 %v429
    %836 = vmatprep.subr.mxu0 0.0
    %837 = vmatpush1.msra.mxu0 %v430
    %838 = vmatprep.subr.mxu0 0.0
    %839 = vmatpush1.msra.mxu0 0.0
    %840 = vmatprep.subr.mxu0 0.0
    %841 = vmatpush1.msra.mxu0 0.0
    %842 = vmatprep.subr.mxu0 0.0
    %843 = vmatpush1.msra.mxu0 0.0
    %844 = vmatprep.subr.mxu0 0.0
    %845 = vmatpush1.msra.mxu0 0.0
    %846 = vmatprep.subr.mxu0 0.0
    %847 = vmatpush1.msra.mxu0 0.0
    %848 = vmatprep.subr.mxu0 0.0
    %849 = vmatpush1.msra.mxu0 0.0
    %850 = vmatprep.subr.mxu0 0.0
    %851 = vmatpush1.msra.mxu0 0.0
    %852 = vmatprep.subr.mxu0 0.0
    %853 = vmatpush1.msra.mxu0 0.0
    %854 = vmatprep.subr.mxu0 0.0
    %855 = vmatpush1.msra.mxu0 0.0
    %856 = vmatprep.subr.mxu0 0.0
    %857 = vmatpush1.msra.mxu0 0.0
    %858 = vmatprep.subr.mxu0 0.0
    %859 = vmatpush1.msra.mxu0 0.0
    %860 = vmatprep.subr.mxu0 0.0
    %861 = vmatpush1.msra.mxu0 0.0
    %862 = vmatprep.subr.mxu0 0.0
    %863 = vmatpush1.msra.mxu0 0.0
    %864 = vmatprep.subr.mxu0 0.0
    %865 = vmatpush1.msra.mxu0 0.0
    %866 = vmatprep.subr.mxu0 0.0
    %867 = vmatpush1.msra.mxu0 0.0
    %868 = vmatprep.subr.mxu0 0.0
    %869 = vmatpush1.msra.mxu0 0.0
    %870 = vmatprep.subr.mxu0 0.0
    %871 = vmatpush1.msra.mxu0 0.0
    %872 = vmatprep.subr.mxu0 0.0
    %873 = vmatpush1.msra.mxu0 0.0
    %874 = vmatprep.subr.mxu0 0.0
    %875 = vmatpush1.msra.mxu0 0.0
    %876 = vmatprep.subr.mxu0 0.0
    %877 = vmatpush1.msra.mxu0 0.0
    %878 = vmatprep.subr.mxu0 0.0
    %879 = vmatpush1.msra.mxu0 0.0
    %880 = vmatprep.subr.mxu0 0.0
    %881 = vmatpush1.msra.mxu0 0.0
    %882 = vmatprep.subr.mxu0 0.0
    %883 = vmatpush1.msra.mxu0 0.0
    %884 = vmatprep.subr.mxu0 0.0
    %885 = vmatpush1.msra.mxu0 0.0
    %886 = vmatprep.subr.mxu0 0.0
    %887 = vmatpush1.msra.mxu0 0.0
    %888 = vmatprep.subr.mxu0 0.0
    %889 = vmatpush1.msra.mxu0 0.0
    %890 = vmatprep.subr.mxu0 0.0
    %891 = vmatpush1.msra.mxu0 0.0
    %892 = vmatprep.subr.mxu0 0.0
    %893 = vmatpush1.msra.mxu0 0.0
    %894 = vmatprep.mubr.f32.mxu0 0.0
    %895 = vmatmul.mubr.f32.gmra.mrb[0].mxu0 %v688
    %v896 = vpop.f32.mrb[0].mxu0
    %v897 = vadd.f32 %v579, %v896
    %v898 = vpop.f32.mrb[0].mxu0
    %899 = vdwg.mxu0
    %v900 = vadd.f32 %v148, %v757
    %v901 = vsub.f32 0.0, %v900
    %v902 = vmul.f32 %v901, 1.442695
    %v903 = vpow.pop %v902
    %v904 = vadd.f32 %v903, 1.0
    %v905 = vrcp.pop %v904
    %v906 = vmul.f32 1.0, %v905
    %v907 = vadd.f32 %v266, %v827
    %v908 = vsub.f32 0.0, %v907
    %v909 = vmul.f32 %v908, 1.442695
    %v910 = vpow.pop %v909
    %v911 = vadd.f32 %v910, 1.0
    %v912 = vrcp.pop %v911
    %v913 = vmul.f32 1.0, %v912
    %v914 = vmul.f32 %v906, %v897
    %v915 = vadd.f32 %v384, %v914
    %v916 = vtanh.pop %v915
    %v917 = vsub.f32 %v679, %v916
    %v918 = vmul.f32 %v913, %v917
    %v919 = vadd.f32 %v916, %v918
    %s920 = scalar_lea.vmem %s1, 8
    %v921 = vld [vmem:[%s920] sm:$0xff]
    %s922 = scalar_lea.vmem %s2, 8
    %v923 = vld [vmem:[%s922] sm:$0xff]
    %v924 = vsub.f32 %v919, %v679
    %926 = vset.pattern.permute.xlu0 0
    %927 = vperm.xlu0 %926, %v921
    %v928 = vpop.permute.xlu0 %927
    %v930 = vmul.f32 %v928, %v924
    %v931 = vadd.f32 %v679, %v930
    %933 = vset.pattern.permute.xlu0 0
    %934 = vperm.xlu0 %933, %v923
    %v935 = vpop.permute.xlu0 %934
    %v937 = vmul.f32 %v935, %v919
    %v938 = vadd.f32 %v686, %v937
    %v940 = vsel %vm51, %v931, 0
    %942 = vmatprep.subr.mxu0 0.0
    %943 = vmatpush1.msra.mxu0 %v417
    %944 = vmatprep.subr.mxu0 0.0
    %945 = vmatpush1.msra.mxu0 %v418
    %946 = vmatprep.subr.mxu0 0.0
    %947 = vmatpush1.msra.mxu0 %v419
    %948 = vmatprep.subr.mxu0 0.0
    %949 = vmatpush1.msra.mxu0 %v420
    %950 = vmatprep.subr.mxu0 0.0
    %951 = vmatpush1.msra.mxu0 0.0
    %952 = vmatprep.subr.mxu0 0.0
    %953 = vmatpush1.msra.mxu0 0.0
    %954 = vmatprep.subr.mxu0 0.0
    %955 = vmatpush1.msra.mxu0 0.0
    %956 = vmatprep.subr.mxu0 0.0
    %957 = vmatpush1.msra.mxu0 0.0
    %958 = vmatprep.subr.mxu0 0.0
    %959 = vmatpush1.msra.mxu0 0.0
    %960 = vmatprep.subr.mxu0 0.0
    %961 = vmatpush1.msra.mxu0 0.0
    %962 = vmatprep.subr.mxu0 0.0
    %963 = vmatpush1.msra.mxu0 0.0
    %964 = vmatprep.subr.mxu0 0.0
    %965 = vmatpush1.msra.mxu0 0.0
    %966 = vmatprep.subr.mxu0 0.0
    %967 = vmatpush1.msra.mxu0 0.0
    %968 = vmatprep.subr.mxu0 0.0
    %969 = vmatpush1.msra.mxu0 0.0
    %970 = vmatprep.subr.mxu0 0.0
    %971 = vmatpush1.msra.mxu0 0.0
    %972 = vmatprep.subr.mxu0 0.0
    %973 = vmatpush1.msra.mxu0 0.0
    %974 = vmatprep.subr.mxu0 0.0
    %975 = vmatpush1.msra.mxu0 0.0
    %976 = vmatprep.subr.mxu0 0.0
    %977 = vmatpush1.msra.mxu0 0.0
    %978 = vmatprep.subr.mxu0 0.0
    %979 = vmatpush1.msra.mxu0 0.0
    %980 = vmatprep.subr.mxu0 0.0
    %981 = vmatpush1.msra.mxu0 0.0
    %982 = vmatprep.subr.mxu0 0.0
    %983 = vmatpush1.msra.mxu0 0.0
    %984 = vmatprep.subr.mxu0 0.0
    %985 = vmatpush1.msra.mxu0 0.0
    %986 = vmatprep.subr.mxu0 0.0
    %987 = vmatpush1.msra.mxu0 0.0
    %988 = vmatprep.subr.mxu0 0.0
    %989 = vmatpush1.msra.mxu0 0.0
    %990 = vmatprep.subr.mxu0 0.0
    %991 = vmatpush1.msra.mxu0 0.0
    %992 = vmatprep.subr.mxu0 0.0
    %993 = vmatpush1.msra.mxu0 0.0
    %994 = vmatprep.subr.mxu0 0.0
    %995 = vmatpush1.msra.mxu0 0.0
    %996 = vmatprep.subr.mxu0 0.0
    %997 = vmatpush1.msra.mxu0 0.0
    %998 = vmatprep.subr.mxu0 0.0
    %999 = vmatpush1.msra.mxu0 0.0
    %1000 = vmatprep.subr.mxu0 0.0
    %1001 = vmatpush1.msra.mxu0 0.0
    %1002 = vmatprep.subr.mxu0 0.0
    %1003 = vmatpush1.msra.mxu0 0.0
    %1004 = vmatprep.subr.mxu0 0.0
    %1005 = vmatpush1.msra.mxu0 0.0
    %1006 = vmatprep.mubr.f32.mxu0 0.0
    %1007 = vmatmul.mubr.f32.gmra.mrb[0].mxu0 %v940
    %v1008 = vpop.f32.mrb[0].mxu0
    %v1009 = vadd.f32 0.0, %v1008
    %v1010 = vpop.f32.mrb[0].mxu0
    %1011 = vdwg.mxu0
    %1012 = vmatprep.subr.mxu0 0.0
    %1013 = vmatpush1.msra.mxu0 %v422
    %1014 = vmatprep.subr.mxu0 0.0
    %1015 = vmatpush1.msra.mxu0 %v423
    %1016 = vmatprep.subr.mxu0 0.0
    %1017 = vmatpush1.msra.mxu0 %v424
    %1018 = vmatprep.subr.mxu0 0.0
    %1019 = vmatpush1.msra.mxu0 %v425
    %1020 = vmatprep.subr.mxu0 0.0
    %1021 = vmatpush1.msra.mxu0 0.0
    %1022 = vmatprep.subr.mxu0 0.0
    %1023 = vmatpush1.msra.mxu0 0.0
    %1024 = vmatprep.subr.mxu0 0.0
    %1025 = vmatpush1.msra.mxu0 0.0
    %1026 = vmatprep.subr.mxu0 0.0
    %1027 = vmatpush1.msra.mxu0 0.0
    %1028 = vmatprep.subr.mxu0 0.0
    %1029 = vmatpush1.msra.mxu0 0.0
    %1030 = vmatprep.subr.mxu0 0.0
    %1031 = vmatpush1.msra.mxu0 0.0
    %1032 = vmatprep.subr.mxu0 0.0
    %1033 = vmatpush1.msra.mxu0 0.0
    %1034 = vmatprep.subr.mxu0 0.0
    %1035 = vmatpush1.msra.mxu0 0.0
    %1036 = vmatprep.subr.mxu0 0.0
    %1037 = vmatpush1.msra.mxu0 0.0
    %1038 = vmatprep.subr.mxu0 0.0
    %1039 = vmatpush1.msra.mxu0 0.0
    %1040 = vmatprep.subr.mxu0 0.0
    %1041 = vmatpush1.msra.mxu0 0.0
    %1042 = vmatprep.subr.mxu0 0.0
    %1043 = vmatpush1.msra.mxu0 0.0
    %1044 = vmatprep.subr.mxu0 0.0
    %1045 = vmatpush1.msra.mxu0 0.0
    %1046 = vmatprep.subr.mxu0 0.0
    %1047 = vmatpush1.msra.mxu0 0.0
    %1048 = vmatprep.subr.mxu0 0.0
    %1049 = vmatpush1.msra.mxu0 0.0
    %1050 = vmatprep.subr.mxu0 0.0
    %1051 = vmatpush1.msra.mxu0 0.0
    %1052 = vmatprep.subr.mxu0 0.0
    %1053 = vmatpush1.msra.mxu0 0.0
    %1054 = vmatprep.subr.mxu0 0.0
    %1055 = vmatpush1.msra.mxu0 0.0
    %1056 = vmatprep.subr.mxu0 0.0
    %1057 = vmatpush1.msra.mxu0 0.0
    %1058 = vmatprep.subr.mxu0 0.0
    %1059 = vmatpush1.msra.mxu0 0.0
    %1060 = vmatprep.subr.mxu0 0.0
    %1061 = vmatpush1.msra.mxu0 0.0
    %1062 = vmatprep.subr.mxu0 0.0
    %1063 = vmatpush1.msra.mxu0 0.0
    %1064 = vmatprep.subr.mxu0 0.0
    %1065 = vmatpush1.msra.mxu0 0.0
    %1066 = vmatprep.subr.mxu0 0.0
    %1067 = vmatpush1.msra.mxu0 0.0
    %1068 = vmatprep.subr.mxu0 0.0
    %1069 = vmatpush1.msra.mxu0 0.0
    %1070 = vmatprep.subr.mxu0 0.0
    %1071 = vmatpush1.msra.mxu0 0.0
    %1072 = vmatprep.subr.mxu0 0.0
    %1073 = vmatpush1.msra.mxu0 0.0
    %1074 = vmatprep.subr.mxu0 0.0
    %1075 = vmatpush1.msra.mxu0 0.0
    %1076 = vmatprep.mubr.f32.mxu0 0.0
    %1077 = vmatmul.mubr.f32.gmra.mrb[0].mxu0 %v940
    %v1078 = vpop.f32.mrb[0].mxu0
    %v1079 = vadd.f32 0.0, %v1078
    %v1080 = vpop.f32.mrb[0].mxu0
    %1081 = vdwg.mxu0
    %1082 = vmatprep.subr.mxu0 0.0
    %1083 = vmatpush1.msra.mxu0 %v427
    %1084 = vmatprep.subr.mxu0 0.0
    %1085 = vmatpush1.msra.mxu0 %v428
    %1086 = vmatprep.subr.mxu0 0.0
    %1087 = vmatpush1.msra.mxu0 %v429
    %1088 = vmatprep.subr.mxu0 0.0
    %1089 = vmatpush1.msra.mxu0 %v430
    %1090 = vmatprep.subr.mxu0 0.0
    %1091 = vmatpush1.msra.mxu0 0.0
    %1092 = vmatprep.subr.mxu0 0.0
    %1093 = vmatpush1.msra.mxu0 0.0
    %1094 = vmatprep.subr.mxu0 0.0
    %1095 = vmatpush1.msra.mxu0 0.0
    %1096 = vmatprep.subr.mxu0 0.0
    %1097 = vmatpush1.msra.mxu0 0.0
    %1098 = vmatprep.subr.mxu0 0.0
    %1099 = vmatpush1.msra.mxu0 0.0
    %1100 = vmatprep.subr.mxu0 0.0
    %1101 = vmatpush1.msra.mxu0 0.0
    %1102 = vmatprep.subr.mxu0 0.0
    %1103 = vmatpush1.msra.mxu0 0.0
    %1104 = vmatprep.subr.mxu0 0.0
    %1105 = vmatpush1.msra.mxu0 0.0
    %1106 = vmatprep.subr.mxu0 0.0
    %1107 = vmatpush1.msra.mxu0 0.0
    %1108 = vmatprep.subr.mxu0 0.0
    %1109 = vmatpush1.msra.mxu0 0.0
    %1110 = vmatprep.subr.mxu0 0.0
    %1111 = vmatpush1.msra.mxu0 0.0
    %1112 = vmatprep.subr.mxu0 0.0
    %1113 = vmatpush1.msra.mxu0 0.0
    %1114 = vmatprep.subr.mxu0 0.0
    %1115 = vmatpush1.msra.mxu0 0.0
    %1116 = vmatprep.subr.mxu0 0.0
    %1117 = vmatpush1.msra.mxu0 0.0
    %1118 = vmatprep.subr.mxu0 0.0
    %1119 = vmatpush1.msra.mxu0 0.0
    %1120 = vmatprep.subr.mxu0 0.0
    %1121 = vmatpush1.msra.mxu0 0.0
    %1122 = vmatprep.subr.mxu0 0.0
    %1123 = vmatpush1.msra.mxu0 0.0
    %1124 = vmatprep.subr.mxu0 0.0
    %1125 = vmatpush1.msra.mxu0 0.0
    %1126 = vmatprep.subr.mxu0 0.0
    %1127 = vmatpush1.msra.mxu0 0.0
    %1128 = vmatprep.subr.mxu0 0.0
    %1129 = vmatpush1.msra.mxu0 0.0
    %1130 = vmatprep.subr.mxu0 0.0
    %1131 = vmatpush1.msra.mxu0 0.0
    %1132 = vmatprep.subr.mxu0 0.0
    %1133 = vmatpush1.msra.mxu0 0.0
    %1134 = vmatprep.subr.mxu0 0.0
    %1135 = vmatpush1.msra.mxu0 0.0
    %1136 = vmatprep.subr.mxu0 0.0
    %1137 = vmatpush1.msra.mxu0 0.0
    %1138 = vmatprep.subr.mxu0 0.0
    %1139 = vmatpush1.msra.mxu0 0.0
    %1140 = vmatprep.subr.mxu0 0.0
    %1141 = vmatpush1.msra.mxu0 0.0
    %1142 = vmatprep.subr.mxu0 0.0
    %1143 = vmatpush1.msra.mxu0 0.0
    %1144 = vmatprep.subr.mxu0 0.0
    %1145 = vmatpush1.msra.mxu0 0.0
    %1146 = vmatprep.mubr.f32.mxu0 0.0
    %1147 = vmatmul.mubr.f32.gmra.mrb[0].mxu0 %v940
    %v1148 = vpop.f32.mrb[0].mxu0
    %v1149 = vadd.f32 %v579, %v1148
    %v1150 = vpop.f32.mrb[0].mxu0
    %1151 = vdwg.mxu0
    %v1152 = vadd.f32 %v153, %v1009
    %v1153 = vsub.f32 0.0, %v1152
    %v1154 = vmul.f32 %v1153, 1.442695
    %v1155 = vpow.pop %v1154
    %v1156 = vadd.f32 %v1155, 1.0
    %v1157 = vrcp.pop %v1156
    %v1158 = vmul.f32 1.0, %v1157
    %v1159 = vadd.f32 %v271, %v1079
    %v1160 = vsub.f32 0.0, %v1159
    %v1161 = vmul.f32 %v1160, 1.442695
    %v1162 = vpow.pop %v1161
    %v1163 = vadd.f32 %v1162, 1.0
    %v1164 = vrcp.pop %v1163
    %v1165 = vmul.f32 1.0, %v1164
    %v1166 = vmul.f32 %v1158, %v1149
    %v1167 = vadd.f32 %v389, %v1166
    %v1168 = vtanh.pop %v1167
    %v1169 = vsub.f32 %v931, %v1168
    %v1170 = vmul.f32 %v1165, %v1169
    %v1171 = vadd.f32 %v1168, %v1170
    %s1172 = scalar_lea.vmem %s1, 16
    %v1173 = vld [vmem:[%s1172] sm:$0xff]
    %s1174 = scalar_lea.vmem %s2, 16
    %v1175 = vld [vmem:[%s1174] sm:$0xff]
    %v1176 = vsub.f32 %v1171, %v931
    %1178 = vset.pattern.permute.xlu0 0
    %1179 = vperm.xlu0 %1178, %v1173
    %v1180 = vpop.permute.xlu0 %1179
    %v1182 = vmul.f32 %v1180, %v1176
    %v1183 = vadd.f32 %v931, %v1182
    %1185 = vset.pattern.permute.xlu0 0
    %1186 = vperm.xlu0 %1185, %v1175
    %v1187 = vpop.permute.xlu0 %1186
    %v1189 = vmul.f32 %v1187, %v1171
    %v1190 = vadd.f32 %v938, %v1189
    %v1192 = vsel %vm51, %v1183, 0
    %1194 = vmatprep.subr.mxu0 0.0
    %1195 = vmatpush1.msra.mxu0 %v417
    %1196 = vmatprep.subr.mxu0 0.0
    %1197 = vmatpush1.msra.mxu0 %v418
    %1198 = vmatprep.subr.mxu0 0.0
    %1199 = vmatpush1.msra.mxu0 %v419
    %1200 = vmatprep.subr.mxu0 0.0
    %1201 = vmatpush1.msra.mxu0 %v420
    %1202 = vmatprep.subr.mxu0 0.0
    %1203 = vmatpush1.msra.mxu0 0.0
    %1204 = vmatprep.subr.mxu0 0.0
    %1205 = vmatpush1.msra.mxu0 0.0
    %1206 = vmatprep.subr.mxu0 0.0
    %1207 = vmatpush1.msra.mxu0 0.0
    %1208 = vmatprep.subr.mxu0 0.0
    %1209 = vmatpush1.msra.mxu0 0.0
    %1210 = vmatprep.subr.mxu0 0.0
    %1211 = vmatpush1.msra.mxu0 0.0
    %1212 = vmatprep.subr.mxu0 0.0
    %1213 = vmatpush1.msra.mxu0 0.0
    %1214 = vmatprep.subr.mxu0 0.0
    %1215 = vmatpush1.msra.mxu0 0.0
    %1216 = vmatprep.subr.mxu0 0.0
    %1217 = vmatpush1.msra.mxu0 0.0
    %1218 = vmatprep.subr.mxu0 0.0
    %1219 = vmatpush1.msra.mxu0 0.0
    %1220 = vmatprep.subr.mxu0 0.0
    %1221 = vmatpush1.msra.mxu0 0.0
    %1222 = vmatprep.subr.mxu0 0.0
    %1223 = vmatpush1.msra.mxu0 0.0
    %1224 = vmatprep.subr.mxu0 0.0
    %1225 = vmatpush1.msra.mxu0 0.0
    %1226 = vmatprep.subr.mxu0 0.0
    %1227 = vmatpush1.msra.mxu0 0.0
    %1228 = vmatprep.subr.mxu0 0.0
    %1229 = vmatpush1.msra.mxu0 0.0
    %1230 = vmatprep.subr.mxu0 0.0
    %1231 = vmatpush1.msra.mxu0 0.0
    %1232 = vmatprep.subr.mxu0 0.0
    %1233 = vmatpush1.msra.mxu0 0.0
    %1234 = vmatprep.subr.mxu0 0.0
    %1235 = vmatpush1.msra.mxu0 0.0
    %1236 = vmatprep.subr.mxu0 0.0
    %1237 = vmatpush1.msra.mxu0 0.0
    %1238 = vmatprep.subr.mxu0 0.0
    %1239 = vmatpush1.msra.mxu0 0.0
    %1240 = vmatprep.subr.mxu0 0.0
    %1241 = vmatpush1.msra.mxu0 0.0
    %1242 = vmatprep.subr.mxu0 0.0
    %1243 = vmatpush1.msra.mxu0 0.0
    %1244 = vmatprep.subr.mxu0 0.0
    %1245 = vmatpush1.msra.mxu0 0.0
    %1246 = vmatprep.subr.mxu0 0.0
    %1247 = vmatpush1.msra.mxu0 0.0
    %1248 = vmatprep.subr.mxu0 0.0
    %1249 = vmatpush1.msra.mxu0 0.0
    %1250 = vmatprep.subr.mxu0 0.0
    %1251 = vmatpush1.msra.mxu0 0.0
    %1252 = vmatprep.subr.mxu0 0.0
    %1253 = vmatpush1.msra.mxu0 0.0
    %1254 = vmatprep.subr.mxu0 0.0
    %1255 = vmatpush1.msra.mxu0 0.0
    %1256 = vmatprep.subr.mxu0 0.0
    %1257 = vmatpush1.msra.mxu0 0.0
    %1258 = vmatprep.mubr.f32.mxu0 0.0
    %1259 = vmatmul.mubr.f32.gmra.mrb[0].mxu0 %v1192
    %v1260 = vpop.f32.mrb[0].mxu0
    %v1261 = vadd.f32 0.0, %v1260
    %v1262 = vpop.f32.mrb[0].mxu0
    %1263 = vdwg.mxu0
    %1264 = vmatprep.subr.mxu0 0.0
    %1265 = vmatpush1.msra.mxu0 %v422
    %1266 = vmatprep.subr.mxu0 0.0
    %1267 = vmatpush1.msra.mxu0 %v423
    %1268 = vmatprep.subr.mxu0 0.0
    %1269 = vmatpush1.msra.mxu0 %v424
    %1270 = vmatprep.subr.mxu0 0.0
    %1271 = vmatpush1.msra.mxu0 %v425
    %1272 = vmatprep.subr.mxu0 0.0
    %1273 = vmatpush1.msra.mxu0 0.0
    %1274 = vmatprep.subr.mxu0 0.0
    %1275 = vmatpush1.msra.mxu0 0.0
    %1276 = vmatprep.subr.mxu0 0.0
    %1277 = vmatpush1.msra.mxu0 0.0
    %1278 = vmatprep.subr.mxu0 0.0
    %1279 = vmatpush1.msra.mxu0 0.0
    %1280 = vmatprep.subr.mxu0 0.0
    %1281 = vmatpush1.msra.mxu0 0.0
    %1282 = vmatprep.subr.mxu0 0.0
    %1283 = vmatpush1.msra.mxu0 0.0
    %1284 = vmatprep.subr.mxu0 0.0
    %1285 = vmatpush1.msra.mxu0 0.0
    %1286 = vmatprep.subr.mxu0 0.0
    %1287 = vmatpush1.msra.mxu0 0.0
    %1288 = vmatprep.subr.mxu0 0.0
    %1289 = vmatpush1.msra.mxu0 0.0
    %1290 = vmatprep.subr.mxu0 0.0
    %1291 = vmatpush1.msra.mxu0 0.0
    %1292 = vmatprep.subr.mxu0 0.0
    %1293 = vmatpush1.msra.mxu0 0.0
    %1294 = vmatprep.subr.mxu0 0.0
    %1295 = vmatpush1.msra.mxu0 0.0
    %1296 = vmatprep.subr.mxu0 0.0
    %1297 = vmatpush1.msra.mxu0 0.0
    %1298 = vmatprep.subr.mxu0 0.0
    %1299 = vmatpush1.msra.mxu0 0.0
    %1300 = vmatprep.subr.mxu0 0.0
    %1301 = vmatpush1.msra.mxu0 0.0
    %1302 = vmatprep.subr.mxu0 0.0
    %1303 = vmatpush1.msra.mxu0 0.0
    %1304 = vmatprep.subr.mxu0 0.0
    %1305 = vmatpush1.msra.mxu0 0.0
    %1306 = vmatprep.subr.mxu0 0.0
    %1307 = vmatpush1.msra.mxu0 0.0
    %1308 = vmatprep.subr.mxu0 0.0
    %1309 = vmatpush1.msra.mxu0 0.0
    %1310 = vmatprep.subr.mxu0 0.0
    %1311 = vmatpush1.msra.mxu0 0.0
    %1312 = vmatprep.subr.mxu0 0.0
    %1313 = vmatpush1.msra.mxu0 0.0
    %1314 = vmatprep.subr.mxu0 0.0
    %1315 = vmatpush1.msra.mxu0 0.0
    %1316 = vmatprep.subr.mxu0 0.0
    %1317 = vmatpush1.msra.mxu0 0.0
    %1318 = vmatprep.subr.mxu0 0.0
    %1319 = vmatpush1.msra.mxu0 0.0
    %1320 = vmatprep.subr.mxu0 0.0
    %1321 = vmatpush1.msra.mxu0 0.0
    %1322 = vmatprep.subr.mxu0 0.0
    %1323 = vmatpush1.msra.mxu0 0.0
    %1324 = vmatprep.subr.mxu0 0.0
    %1325 = vmatpush1.msra.mxu0 0.0
    %1326 = vmatprep.subr.mxu0 0.0
    %1327 = vmatpush1.msra.mxu0 0.0
    %1328 = vmatprep.mubr.f32.mxu0 0.0
    %1329 = vmatmul.mubr.f32.gmra.mrb[0].mxu0 %v1192
    %v1330 = vpop.f32.mrb[0].mxu0
    %v1331 = vadd.f32 0.0, %v1330
    %v1332 = vpop.f32.mrb[0].mxu0
    %1333 = vdwg.mxu0
    %1334 = vmatprep.subr.mxu0 0.0
    %1335 = vmatpush1.msra.mxu0 %v427
    %1336 = vmatprep.subr.mxu0 0.0
    %1337 = vmatpush1.msra.mxu0 %v428
    %1338 = vmatprep.subr.mxu0 0.0
    %1339 = vmatpush1.msra.mxu0 %v429
    %1340 = vmatprep.subr.mxu0 0.0
    %1341 = vmatpush1.msra.mxu0 %v430
    %1342 = vmatprep.subr.mxu0 0.0
    %1343 = vmatpush1.msra.mxu0 0.0
    %1344 = vmatprep.subr.mxu0 0.0
    %1345 = vmatpush1.msra.mxu0 0.0
    %1346 = vmatprep.subr.mxu0 0.0
    %1347 = vmatpush1.msra.mxu0 0.0
    %1348 = vmatprep.subr.mxu0 0.0
    %1349 = vmatpush1.msra.mxu0 0.0
    %1350 = vmatprep.subr.mxu0 0.0
    %1351 = vmatpush1.msra.mxu0 0.0
    %1352 = vmatprep.subr.mxu0 0.0
    %1353 = vmatpush1.msra.mxu0 0.0
    %1354 = vmatprep.subr.mxu0 0.0
    %1355 = vmatpush1.msra.mxu0 0.0
    %1356 = vmatprep.subr.mxu0 0.0
    %1357 = vmatpush1.msra.mxu0 0.0
    %1358 = vmatprep.subr.mxu0 0.0
    %1359 = vmatpush1.msra.mxu0 0.0
    %1360 = vmatprep.subr.mxu0 0.0
    %1361 = vmatpush1.msra.mxu0 0.0
    %1362 = vmatprep.subr.mxu0 0.0
    %1363 = vmatpush1.msra.mxu0 0.0
    %1364 = vmatprep.subr.mxu0 0.0
    %1365 = vmatpush1.msra.mxu0 0.0
    %1366 = vmatprep.subr.mxu0 0.0
    %1367 = vmatpush1.msra.mxu0 0.0
    %1368 = vmatprep.subr.mxu0 0.0
    %1369 = vmatpush1.msra.mxu0 0.0
    %1370 = vmatprep.subr.mxu0 0.0
    %1371 = vmatpush1.msra.mxu0 0.0
    %1372 = vmatprep.subr.mxu0 0.0
    %1373 = vmatpush1.msra.mxu0 0.0
    %1374 = vmatprep.subr.mxu0 0.0
    %1375 = vmatpush1.msra.mxu0 0.0
    %1376 = vmatprep.subr.mxu0 0.0
    %1377 = vmatpush1.msra.mxu0 0.0
    %1378 = vmatprep.subr.mxu0 0.0
    %1379 = vmatpush1.msra.mxu0 0.0
    %1380 = vmatprep.subr.mxu0 0.0
    %1381 = vmatpush1.msra.mxu0 0.0
    %1382 = vmatprep.subr.mxu0 0.0
    %1383 = vmatpush1.msra.mxu0 0.0
    %1384 = vmatprep.subr.mxu0 0.0
    %1385 = vmatpush1.msra.mxu0 0.0
    %1386 = vmatprep.subr.mxu0 0.0
    %1387 = vmatpush1.msra.mxu0 0.0
    %1388 = vmatprep.subr.mxu0 0.0
    %1389 = vmatpush1.msra.mxu0 0.0
    %1390 = vmatprep.subr.mxu0 0.0
    %1391 = vmatpush1.msra.mxu0 0.0
    %1392 = vmatprep.subr.mxu0 0.0
    %1393 = vmatpush1.msra.mxu0 0.0
    %1394 = vmatprep.subr.mxu0 0.0
    %1395 = vmatpush1.msra.mxu0 0.0
    %1396 = vmatprep.subr.mxu0 0.0
    %1397 = vmatpush1.msra.mxu0 0.0
    %1398 = vmatprep.mubr.f32.mxu0 0.0
    %1399 = vmatmul.mubr.f32.gmra.mrb[0].mxu0 %v1192
    %v1400 = vpop.f32.mrb[0].mxu0
    %v1401 = vadd.f32 %v579, %v1400
    %v1402 = vpop.f32.mrb[0].mxu0
    %1403 = vdwg.mxu0
    %v1404 = vadd.f32 %v158, %v1261
    %v1405 = vsub.f32 0.0, %v1404
    %v1406 = vmul.f32 %v1405, 1.442695
    %v1407 = vpow.pop %v1406
    %v1408 = vadd.f32 %v1407, 1.0
    %v1409 = vrcp.pop %v1408
    %v1410 = vmul.f32 1.0, %v1409
    %v1411 = vadd.f32 %v276, %v1331
    %v1412 = vsub.f32 0.0, %v1411
    %v1413 = vmul.f32 %v1412, 1.442695
    %v1414 = vpow.pop %v1413
    %v1415 = vadd.f32 %v1414, 1.0
    %v1416 = vrcp.pop %v1415
    %v1417 = vmul.f32 1.0, %v1416
    %v1418 = vmul.f32 %v1410, %v1401
    %v1419 = vadd.f32 %v394, %v1418
    %v1420 = vtanh.pop %v1419
    %v1421 = vsub.f32 %v1183, %v1420
    %v1422 = vmul.f32 %v1417, %v1421
    %v1423 = vadd.f32 %v1420, %v1422
    %s1424 = scalar_lea.vmem %s1, 24
    %v1425 = vld [vmem:[%s1424] sm:$0xff]
    %s1426 = scalar_lea.vmem %s2, 24
    %v1427 = vld [vmem:[%s1426] sm:$0xff]
    %v1428 = vsub.f32 %v1423, %v1183
    %1430 = vset.pattern.permute.xlu0 0
    %1431 = vperm.xlu0 %1430, %v1425
    %v1432 = vpop.permute.xlu0 %1431
    %v1434 = vmul.f32 %v1432, %v1428
    %v1435 = vadd.f32 %v1183, %v1434
    %1437 = vset.pattern.permute.xlu0 0
    %1438 = vperm.xlu0 %1437, %v1427
    %v1439 = vpop.permute.xlu0 %1438
    %v1441 = vmul.f32 %v1439, %v1423
    %v1442 = vadd.f32 %v1190, %v1441
    %v1444 = vsel %vm51, %v1435, 0
    %1446 = vmatprep.subr.mxu0 0.0
    %1447 = vmatpush1.msra.mxu0 %v417
    %1448 = vmatprep.subr.mxu0 0.0
    %1449 = vmatpush1.msra.mxu0 %v418
    %1450 = vmatprep.subr.mxu0 0.0
    %1451 = vmatpush1.msra.mxu0 %v419
    %1452 = vmatprep.subr.mxu0 0.0
    %1453 = vmatpush1.msra.mxu0 %v420
    %1454 = vmatprep.subr.mxu0 0.0
    %1455 = vmatpush1.msra.mxu0 0.0
    %1456 = vmatprep.subr.mxu0 0.0
    %1457 = vmatpush1.msra.mxu0 0.0
    %1458 = vmatprep.subr.mxu0 0.0
    %1459 = vmatpush1.msra.mxu0 0.0
    %1460 = vmatprep.subr.mxu0 0.0
    %1461 = vmatpush1.msra.mxu0 0.0
    %1462 = vmatprep.subr.mxu0 0.0
    %1463 = vmatpush1.msra.mxu0 0.0
    %1464 = vmatprep.subr.mxu0 0.0
    %1465 = vmatpush1.msra.mxu0 0.0
    %1466 = vmatprep.subr.mxu0 0.0
    %1467 = vmatpush1.msra.mxu0 0.0
    %1468 = vmatprep.subr.mxu0 0.0
    %1469 = vmatpush1.msra.mxu0 0.0
    %1470 = vmatprep.subr.mxu0 0.0
    %1471 = vmatpush1.msra.mxu0 0.0
    %1472 = vmatprep.subr.mxu0 0.0
    %1473 = vmatpush1.msra.mxu0 0.0
    %1474 = vmatprep.subr.mxu0 0.0
    %1475 = vmatpush1.msra.mxu0 0.0
    %1476 = vmatprep.subr.mxu0 0.0
    %1477 = vmatpush1.msra.mxu0 0.0
    %1478 = vmatprep.subr.mxu0 0.0
    %1479 = vmatpush1.msra.mxu0 0.0
    %1480 = vmatprep.subr.mxu0 0.0
    %1481 = vmatpush1.msra.mxu0 0.0
    %1482 = vmatprep.subr.mxu0 0.0
    %1483 = vmatpush1.msra.mxu0 0.0
    %1484 = vmatprep.subr.mxu0 0.0
    %1485 = vmatpush1.msra.mxu0 0.0
    %1486 = vmatprep.subr.mxu0 0.0
    %1487 = vmatpush1.msra.mxu0 0.0
    %1488 = vmatprep.subr.mxu0 0.0
    %1489 = vmatpush1.msra.mxu0 0.0
    %1490 = vmatprep.subr.mxu0 0.0
    %1491 = vmatpush1.msra.mxu0 0.0
    %1492 = vmatprep.subr.mxu0 0.0
    %1493 = vmatpush1.msra.mxu0 0.0
    %1494 = vmatprep.subr.mxu0 0.0
    %1495 = vmatpush1.msra.mxu0 0.0
    %1496 = vmatprep.subr.mxu0 0.0
    %1497 = vmatpush1.msra.mxu0 0.0
    %1498 = vmatprep.subr.mxu0 0.0
    %1499 = vmatpush1.msra.mxu0 0.0
    %1500 = vmatprep.subr.mxu0 0.0
    %1501 = vmatpush1.msra.mxu0 0.0
    %1502 = vmatprep.subr.mxu0 0.0
    %1503 = vmatpush1.msra.mxu0 0.0
    %1504 = vmatprep.subr.mxu0 0.0
    %1505 = vmatpush1.msra.mxu0 0.0
    %1506 = vmatprep.subr.mxu0 0.0
    %1507 = vmatpush1.msra.mxu0 0.0
    %1508 = vmatprep.subr.mxu0 0.0
    %1509 = vmatpush1.msra.mxu0 0.0
    %1510 = vmatprep.mubr.f32.mxu0 0.0
    %1511 = vmatmul.mubr.f32.gmra.mrb[0].mxu0 %v1444
    %v1512 = vpop.f32.mrb[0].mxu0
    %v1513 = vadd.f32 0.0, %v1512
    %v1514 = vpop.f32.mrb[0].mxu0
    %1515 = vdwg.mxu0
    %1516 = vmatprep.subr.mxu0 0.0
    %1517 = vmatpush1.msra.mxu0 %v422
    %1518 = vmatprep.subr.mxu0 0.0
    %1519 = vmatpush1.msra.mxu0 %v423
    %1520 = vmatprep.subr.mxu0 0.0
    %1521 = vmatpush1.msra.mxu0 %v424
    %1522 = vmatprep.subr.mxu0 0.0
    %1523 = vmatpush1.msra.mxu0 %v425
    %1524 = vmatprep.subr.mxu0 0.0
    %1525 = vmatpush1.msra.mxu0 0.0
    %1526 = vmatprep.subr.mxu0 0.0
    %1527 = vmatpush1.msra.mxu0 0.0
    %1528 = vmatprep.subr.mxu0 0.0
    %1529 = vmatpush1.msra.mxu0 0.0
    %1530 = vmatprep.subr.mxu0 0.0
    %1531 = vmatpush1.msra.mxu0 0.0
    %1532 = vmatprep.subr.mxu0 0.0
    %1533 = vmatpush1.msra.mxu0 0.0
    %1534 = vmatprep.subr.mxu0 0.0
    %1535 = vmatpush1.msra.mxu0 0.0
    %1536 = vmatprep.subr.mxu0 0.0
    %1537 = vmatpush1.msra.mxu0 0.0
    %1538 = vmatprep.subr.mxu0 0.0
    %1539 = vmatpush1.msra.mxu0 0.0
    %1540 = vmatprep.subr.mxu0 0.0
    %1541 = vmatpush1.msra.mxu0 0.0
    %1542 = vmatprep.subr.mxu0 0.0
    %1543 = vmatpush1.msra.mxu0 0.0
    %1544 = vmatprep.subr.mxu0 0.0
    %1545 = vmatpush1.msra.mxu0 0.0
    %1546 = vmatprep.subr.mxu0 0.0
    %1547 = vmatpush1.msra.mxu0 0.0
    %1548 = vmatprep.subr.mxu0 0.0
    %1549 = vmatpush1.msra.mxu0 0.0
    %1550 = vmatprep.subr.mxu0 0.0
    %1551 = vmatpush1.msra.mxu0 0.0
    %1552 = vmatprep.subr.mxu0 0.0
    %1553 = vmatpush1.msra.mxu0 0.0
    %1554 = vmatprep.subr.mxu0 0.0
    %1555 = vmatpush1.msra.mxu0 0.0
    %1556 = vmatprep.subr.mxu0 0.0
    %1557 = vmatpush1.msra.mxu0 0.0
    %1558 = vmatprep.subr.mxu0 0.0
    %1559 = vmatpush1.msra.mxu0 0.0
    %1560 = vmatprep.subr.mxu0 0.0
    %1561 = vmatpush1.msra.mxu0 0.0
    %1562 = vmatprep.subr.mxu0 0.0
    %1563 = vmatpush1.msra.mxu0 0.0
    %1564 = vmatprep.subr.mxu0 0.0
    %1565 = vmatpush1.msra.mxu0 0.0
    %1566 = vmatprep.subr.mxu0 0.0
    %1567 = vmatpush1.msra.mxu0 0.0
    %1568 = vmatprep.subr.mxu0 0.0
    %1569 = vmatpush1.msra.mxu0 0.0
    %1570 = vmatprep.subr.mxu0 0.0
    %1571 = vmatpush1.msra.mxu0 0.0
    %1572 = vmatprep.subr.mxu0 0.0
    %1573 = vmatpush1.msra.mxu0 0.0
    %1574 = vmatprep.subr.mxu0 0.0
    %1575 = vmatpush1.msra.mxu0 0.0
    %1576 = vmatprep.subr.mxu0 0.0
    %1577 = vmatpush1.msra.mxu0 0.0
    %1578 = vmatprep.subr.mxu0 0.0
    %1579 = vmatpush1.msra.mxu0 0.0
    %1580 = vmatprep.mubr.f32.mxu0 0.0
    %1581 = vmatmul.mubr.f32.gmra.mrb[0].mxu0 %v1444
    %v1582 = vpop.f32.mrb[0].mxu0
    %v1583 = vadd.f32 0.0, %v1582
    %v1584 = vpop.f32.mrb[0].mxu0
    %1585 = vdwg.mxu0
    %1586 = vmatprep.subr.mxu0 0.0
    %1587 = vmatpush1.msra.mxu0 %v427
    %1588 = vmatprep.subr.mxu0 0.0
    %1589 = vmatpush1.msra.mxu0 %v428
    %1590 = vmatprep.subr.mxu0 0.0
    %1591 = vmatpush1.msra.mxu0 %v429
    %1592 = vmatprep.subr.mxu0 0.0
    %1593 = vmatpush1.msra.mxu0 %v430
    %1594 = vmatprep.subr.mxu0 0.0
    %1595 = vmatpush1.msra.mxu0 0.0
    %1596 = vmatprep.subr.mxu0 0.0
    %1597 = vmatpush1.msra.mxu0 0.0
    %1598 = vmatprep.subr.mxu0 0.0
    %1599 = vmatpush1.msra.mxu0 0.0
    %1600 = vmatprep.subr.mxu0 0.0
    %1601 = vmatpush1.msra.mxu0 0.0
    %1602 = vmatprep.subr.mxu0 0.0
    %1603 = vmatpush1.msra.mxu0 0.0
    %1604 = vmatprep.subr.mxu0 0.0
    %1605 = vmatpush1.msra.mxu0 0.0
    %1606 = vmatprep.subr.mxu0 0.0
    %1607 = vmatpush1.msra.mxu0 0.0
    %1608 = vmatprep.subr.mxu0 0.0
    %1609 = vmatpush1.msra.mxu0 0.0
    %1610 = vmatprep.subr.mxu0 0.0
    %1611 = vmatpush1.msra.mxu0 0.0
    %1612 = vmatprep.subr.mxu0 0.0
    %1613 = vmatpush1.msra.mxu0 0.0
    %1614 = vmatprep.subr.mxu0 0.0
    %1615 = vmatpush1.msra.mxu0 0.0
    %1616 = vmatprep.subr.mxu0 0.0
    %1617 = vmatpush1.msra.mxu0 0.0
    %1618 = vmatprep.subr.mxu0 0.0
    %1619 = vmatpush1.msra.mxu0 0.0
    %1620 = vmatprep.subr.mxu0 0.0
    %1621 = vmatpush1.msra.mxu0 0.0
    %1622 = vmatprep.subr.mxu0 0.0
    %1623 = vmatpush1.msra.mxu0 0.0
    %1624 = vmatprep.subr.mxu0 0.0
    %1625 = vmatpush1.msra.mxu0 0.0
    %1626 = vmatprep.subr.mxu0 0.0
    %1627 = vmatpush1.msra.mxu0 0.0
    %1628 = vmatprep.subr.mxu0 0.0
    %1629 = vmatpush1.msra.mxu0 0.0
    %1630 = vmatprep.subr.mxu0 0.0
    %1631 = vmatpush1.msra.mxu0 0.0
    %1632 = vmatprep.subr.mxu0 0.0
    %1633 = vmatpush1.msra.mxu0 0.0
    %1634 = vmatprep.subr.mxu0 0.0
    %1635 = vmatpush1.msra.mxu0 0.0
    %1636 = vmatprep.subr.mxu0 0.0
    %1637 = vmatpush1.msra.mxu0 0.0
    %1638 = vmatprep.subr.mxu0 0.0
    %1639 = vmatpush1.msra.mxu0 0.0
    %1640 = vmatprep.subr.mxu0 0.0
    %1641 = vmatpush1.msra.mxu0 0.0
    %1642 = vmatprep.subr.mxu0 0.0
    %1643 = vmatpush1.msra.mxu0 0.0
    %1644 = vmatprep.subr.mxu0 0.0
    %1645 = vmatpush1.msra.mxu0 0.0
    %1646 = vmatprep.subr.mxu0 0.0
    %1647 = vmatpush1.msra.mxu0 0.0
    %1648 = vmatprep.subr.mxu0 0.0
    %1649 = vmatpush1.msra.mxu0 0.0
    %1650 = vmatprep.mubr.f32.mxu0 0.0
    %1651 = vmatmul.mubr.f32.gmra.mrb[0].mxu0 %v1444
    %v1652 = vpop.f32.mrb[0].mxu0
    %v1653 = vadd.f32 %v579, %v1652
    %v1654 = vpop.f32.mrb[0].mxu0
    %1655 = vdwg.mxu0
    %v1656 = vadd.f32 %v163, %v1513
    %v1657 = vsub.f32 0.0, %v1656
    %v1658 = vmul.f32 %v1657, 1.442695
    %v1659 = vpow.pop %v1658
    %v1660 = vadd.f32 %v1659, 1.0
    %v1661 = vrcp.pop %v1660
    %v1662 = vmul.f32 1.0, %v1661
    %v1663 = vadd.f32 %v281, %v1583
    %v1664 = vsub.f32 0.0, %v1663
    %v1665 = vmul.f32 %v1664, 1.442695
    %v1666 = vpow.pop %v1665
    %v1667 = vadd.f32 %v1666, 1.0
    %v1668 = vrcp.pop %v1667
    %v1669 = vmul.f32 1.0, %v1668
    %v1670 = vmul.f32 %v1662, %v1653
    %v1671 = vadd.f32 %v399, %v1670
    %v1672 = vtanh.pop %v1671
    %v1673 = vsub.f32 %v1435, %v1672
    %v1674 = vmul.f32 %v1669, %v1673
    %v1675 = vadd.f32 %v1672, %v1674
    %s1676 = scalar_lea.vmem %s1, 32
    %v1677 = vld [vmem:[%s1676] sm:$0xff]
    %s1678 = scalar_lea.vmem %s2, 32
    %v1679 = vld [vmem:[%s1678] sm:$0xff]
    %v1680 = vsub.f32 %v1675, %v1435
    %1682 = vset.pattern.permute.xlu0 0
    %1683 = vperm.xlu0 %1682, %v1677
    %v1684 = vpop.permute.xlu0 %1683
    %v1686 = vmul.f32 %v1684, %v1680
    %v1687 = vadd.f32 %v1435, %v1686
    %1689 = vset.pattern.permute.xlu0 0
    %1690 = vperm.xlu0 %1689, %v1679
    %v1691 = vpop.permute.xlu0 %1690
    %v1693 = vmul.f32 %v1691, %v1675
    %v1694 = vadd.f32 %v1442, %v1693
    %v1696 = vsel %vm51, %v1687, 0
    %1698 = vmatprep.subr.mxu0 0.0
    %1699 = vmatpush1.msra.mxu0 %v417
    %1700 = vmatprep.subr.mxu0 0.0
    %1701 = vmatpush1.msra.mxu0 %v418
    %1702 = vmatprep.subr.mxu0 0.0
    %1703 = vmatpush1.msra.mxu0 %v419
    %1704 = vmatprep.subr.mxu0 0.0
    %1705 = vmatpush1.msra.mxu0 %v420
    %1706 = vmatprep.subr.mxu0 0.0
    %1707 = vmatpush1.msra.mxu0 0.0
    %1708 = vmatprep.subr.mxu0 0.0
    %1709 = vmatpush1.msra.mxu0 0.0
    %1710 = vmatprep.subr.mxu0 0.0
    %1711 = vmatpush1.msra.mxu0 0.0
    %1712 = vmatprep.subr.mxu0 0.0
    %1713 = vmatpush1.msra.mxu0 0.0
    %1714 = vmatprep.subr.mxu0 0.0
    %1715 = vmatpush1.msra.mxu0 0.0
    %1716 = vmatprep.subr.mxu0 0.0
    %1717 = vmatpush1.msra.mxu0 0.0
    %1718 = vmatprep.subr.mxu0 0.0
    %1719 = vmatpush1.msra.mxu0 0.0
    %1720 = vmatprep.subr.mxu0 0.0
    %1721 = vmatpush1.msra.mxu0 0.0
    %1722 = vmatprep.subr.mxu0 0.0
    %1723 = vmatpush1.msra.mxu0 0.0
    %1724 = vmatprep.subr.mxu0 0.0
    %1725 = vmatpush1.msra.mxu0 0.0
    %1726 = vmatprep.subr.mxu0 0.0
    %1727 = vmatpush1.msra.mxu0 0.0
    %1728 = vmatprep.subr.mxu0 0.0
    %1729 = vmatpush1.msra.mxu0 0.0
    %1730 = vmatprep.subr.mxu0 0.0
    %1731 = vmatpush1.msra.mxu0 0.0
    %1732 = vmatprep.subr.mxu0 0.0
    %1733 = vmatpush1.msra.mxu0 0.0
    %1734 = vmatprep.subr.mxu0 0.0
    %1735 = vmatpush1.msra.mxu0 0.0
    %1736 = vmatprep.subr.mxu0 0.0
    %1737 = vmatpush1.msra.mxu0 0.0
    %1738 = vmatprep.subr.mxu0 0.0
    %1739 = vmatpush1.msra.mxu0 0.0
    %1740 = vmatprep.subr.mxu0 0.0
    %1741 = vmatpush1.msra.mxu0 0.0
    %1742 = vmatprep.subr.mxu0 0.0
    %1743 = vmatpush1.msra.mxu0 0.0
    %1744 = vmatprep.subr.mxu0 0.0
    %1745 = vmatpush1.msra.mxu0 0.0
    %1746 = vmatprep.subr.mxu0 0.0
    %1747 = vmatpush1.msra.mxu0 0.0
    %1748 = vmatprep.subr.mxu0 0.0
    %1749 = vmatpush1.msra.mxu0 0.0
    %1750 = vmatprep.subr.mxu0 0.0
    %1751 = vmatpush1.msra.mxu0 0.0
    %1752 = vmatprep.subr.mxu0 0.0
    %1753 = vmatpush1.msra.mxu0 0.0
    %1754 = vmatprep.subr.mxu0 0.0
    %1755 = vmatpush1.msra.mxu0 0.0
    %1756 = vmatprep.subr.mxu0 0.0
    %1757 = vmatpush1.msra.mxu0 0.0
    %1758 = vmatprep.subr.mxu0 0.0
    %1759 = vmatpush1.msra.mxu0 0.0
    %1760 = vmatprep.subr.mxu0 0.0
    %1761 = vmatpush1.msra.mxu0 0.0
    %1762 = vmatprep.mubr.f32.mxu0 0.0
    %1763 = vmatmul.mubr.f32.gmra.mrb[0].mxu0 %v1696
    %v1764 = vpop.f32.mrb[0].mxu0
    %v1765 = vadd.f32 0.0, %v1764
    %v1766 = vpop.f32.mrb[0].mxu0
    %1767 = vdwg.mxu0
    %1768 = vmatprep.subr.mxu0 0.0
    %1769 = vmatpush1.msra.mxu0 %v422
    %1770 = vmatprep.subr.mxu0 0.0
    %1771 = vmatpush1.msra.mxu0 %v423
    %1772 = vmatprep.subr.mxu0 0.0
    %1773 = vmatpush1.msra.mxu0 %v424
    %1774 = vmatprep.subr.mxu0 0.0
    %1775 = vmatpush1.msra.mxu0 %v425
    %1776 = vmatprep.subr.mxu0 0.0
    %1777 = vmatpush1.msra.mxu0 0.0
    %1778 = vmatprep.subr.mxu0 0.0
    %1779 = vmatpush1.msra.mxu0 0.0
    %1780 = vmatprep.subr.mxu0 0.0
    %1781 = vmatpush1.msra.mxu0 0.0
    %1782 = vmatprep.subr.mxu0 0.0
    %1783 = vmatpush1.msra.mxu0 0.0
    %1784 = vmatprep.subr.mxu0 0.0
    %1785 = vmatpush1.msra.mxu0 0.0
    %1786 = vmatprep.subr.mxu0 0.0
    %1787 = vmatpush1.msra.mxu0 0.0
    %1788 = vmatprep.subr.mxu0 0.0
    %1789 = vmatpush1.msra.mxu0 0.0
    %1790 = vmatprep.subr.mxu0 0.0
    %1791 = vmatpush1.msra.mxu0 0.0
    %1792 = vmatprep.subr.mxu0 0.0
    %1793 = vmatpush1.msra.mxu0 0.0
    %1794 = vmatprep.subr.mxu0 0.0
    %1795 = vmatpush1.msra.mxu0 0.0
    %1796 = vmatprep.subr.mxu0 0.0
    %1797 = vmatpush1.msra.mxu0 0.0
    %1798 = vmatprep.subr.mxu0 0.0
    %1799 = vmatpush1.msra.mxu0 0.0
    %1800 = vmatprep.subr.mxu0 0.0
    %1801 = vmatpush1.msra.mxu0 0.0
    %1802 = vmatprep.subr.mxu0 0.0
    %1803 = vmatpush1.msra.mxu0 0.0
    %1804 = vmatprep.subr.mxu0 0.0
    %1805 = vmatpush1.msra.mxu0 0.0
    %1806 = vmatprep.subr.mxu0 0.0
    %1807 = vmatpush1.msra.mxu0 0.0
    %1808 = vmatprep.subr.mxu0 0.0
    %1809 = vmatpush1.msra.mxu0 0.0
    %1810 = vmatprep.subr.mxu0 0.0
    %1811 = vmatpush1.msra.mxu0 0.0
    %1812 = vmatprep.subr.mxu0 0.0
    %1813 = vmatpush1.msra.mxu0 0.0
    %1814 = vmatprep.subr.mxu0 0.0
    %1815 = vmatpush1.msra.mxu0 0.0
    %1816 = vmatprep.subr.mxu0 0.0
    %1817 = vmatpush1.msra.mxu0 0.0
    %1818 = vmatprep.subr.mxu0 0.0
    %1819 = vmatpush1.msra.mxu0 0.0
    %1820 = vmatprep.subr.mxu0 0.0
    %1821 = vmatpush1.msra.mxu0 0.0
    %1822 = vmatprep.subr.mxu0 0.0
    %1823 = vmatpush1.msra.mxu0 0.0
    %1824 = vmatprep.subr.mxu0 0.0
    %1825 = vmatpush1.msra.mxu0 0.0
    %1826 = vmatprep.subr.mxu0 0.0
    %1827 = vmatpush1.msra.mxu0 0.0
    %1828 = vmatprep.subr.mxu0 0.0
    %1829 = vmatpush1.msra.mxu0 0.0
    %1830 = vmatprep.subr.mxu0 0.0
    %1831 = vmatpush1.msra.mxu0 0.0
    %1832 = vmatprep.mubr.f32.mxu0 0.0
    %1833 = vmatmul.mubr.f32.gmra.mrb[0].mxu0 %v1696
    %v1834 = vpop.f32.mrb[0].mxu0
    %v1835 = vadd.f32 0.0, %v1834
    %v1836 = vpop.f32.mrb[0].mxu0
    %1837 = vdwg.mxu0
    %1838 = vmatprep.subr.mxu0 0.0
    %1839 = vmatpush1.msra.mxu0 %v427
    %1840 = vmatprep.subr.mxu0 0.0
    %1841 = vmatpush1.msra.mxu0 %v428
    %1842 = vmatprep.subr.mxu0 0.0
    %1843 = vmatpush1.msra.mxu0 %v429
    %1844 = vmatprep.subr.mxu0 0.0
    %1845 = vmatpush1.msra.mxu0 %v430
    %1846 = vmatprep.subr.mxu0 0.0
    %1847 = vmatpush1.msra.mxu0 0.0
    %1848 = vmatprep.subr.mxu0 0.0
    %1849 = vmatpush1.msra.mxu0 0.0
    %1850 = vmatprep.subr.mxu0 0.0
    %1851 = vmatpush1.msra.mxu0 0.0
    %1852 = vmatprep.subr.mxu0 0.0
    %1853 = vmatpush1.msra.mxu0 0.0
    %1854 = vmatprep.subr.mxu0 0.0
    %1855 = vmatpush1.msra.mxu0 0.0
    %1856 = vmatprep.subr.mxu0 0.0
    %1857 = vmatpush1.msra.mxu0 0.0
    %1858 = vmatprep.subr.mxu0 0.0
    %1859 = vmatpush1.msra.mxu0 0.0
    %1860 = vmatprep.subr.mxu0 0.0
    %1861 = vmatpush1.msra.mxu0 0.0
    %1862 = vmatprep.subr.mxu0 0.0
    %1863 = vmatpush1.msra.mxu0 0.0
    %1864 = vmatprep.subr.mxu0 0.0
    %1865 = vmatpush1.msra.mxu0 0.0
    %1866 = vmatprep.subr.mxu0 0.0
    %1867 = vmatpush1.msra.mxu0 0.0
    %1868 = vmatprep.subr.mxu0 0.0
    %1869 = vmatpush1.msra.mxu0 0.0
    %1870 = vmatprep.subr.mxu0 0.0
    %1871 = vmatpush1.msra.mxu0 0.0
    %1872 = vmatprep.subr.mxu0 0.0
    %1873 = vmatpush1.msra.mxu0 0.0
    %1874 = vmatprep.subr.mxu0 0.0
    %1875 = vmatpush1.msra.mxu0 0.0
    %1876 = vmatprep.subr.mxu0 0.0
    %1877 = vmatpush1.msra.mxu0 0.0
    %1878 = vmatprep.subr.mxu0 0.0
    %1879 = vmatpush1.msra.mxu0 0.0
    %1880 = vmatprep.subr.mxu0 0.0
    %1881 = vmatpush1.msra.mxu0 0.0
    %1882 = vmatprep.subr.mxu0 0.0
    %1883 = vmatpush1.msra.mxu0 0.0
    %1884 = vmatprep.subr.mxu0 0.0
    %1885 = vmatpush1.msra.mxu0 0.0
    %1886 = vmatprep.subr.mxu0 0.0
    %1887 = vmatpush1.msra.mxu0 0.0
    %1888 = vmatprep.subr.mxu0 0.0
    %1889 = vmatpush1.msra.mxu0 0.0
    %1890 = vmatprep.subr.mxu0 0.0
    %1891 = vmatpush1.msra.mxu0 0.0
    %1892 = vmatprep.subr.mxu0 0.0
    %1893 = vmatpush1.msra.mxu0 0.0
    %1894 = vmatprep.subr.mxu0 0.0
    %1895 = vmatpush1.msra.mxu0 0.0
    %1896 = vmatprep.subr.mxu0 0.0
    %1897 = vmatpush1.msra.mxu0 0.0
    %1898 = vmatprep.subr.mxu0 0.0
    %1899 = vmatpush1.msra.mxu0 0.0
    %1900 = vmatprep.subr.mxu0 0.0
    %1901 = vmatpush1.msra.mxu0 0.0
    %1902 = vmatprep.mubr.f32.mxu0 0.0
    %1903 = vmatmul.mubr.f32.gmra.mrb[0].mxu0 %v1696
    %v1904 = vpop.f32.mrb[0].mxu0
    %v1905 = vadd.f32 %v579, %v1904
    %v1906 = vpop.f32.mrb[0].mxu0
    %1907 = vdwg.mxu0
    %v1908 = vadd.f32 %v168, %v1765
    %v1909 = vsub.f32 0.0, %v1908
    %v1910 = vmul.f32 %v1909, 1.442695
    %v1911 = vpow.pop %v1910
    %v1912 = vadd.f32 %v1911, 1.0
    %v1913 = vrcp.pop %v1912
    %v1914 = vmul.f32 1.0, %v1913
    %v1915 = vadd.f32 %v286, %v1835
    %v1916 = vsub.f32 0.0, %v1915
    %v1917 = vmul.f32 %v1916, 1.442695
    %v1918 = vpow.pop %v1917
    %v1919 = vadd.f32 %v1918, 1.0
    %v1920 = vrcp.pop %v1919
    %v1921 = vmul.f32 1.0, %v1920
    %v1922 = vmul.f32 %v1914, %v1905
    %v1923 = vadd.f32 %v404, %v1922
    %v1924 = vtanh.pop %v1923
    %v1925 = vsub.f32 %v1687, %v1924
    %v1926 = vmul.f32 %v1921, %v1925
    %v1927 = vadd.f32 %v1924, %v1926
    %s1928 = scalar_lea.vmem %s1, 40
    %v1929 = vld [vmem:[%s1928] sm:$0xff]
    %s1930 = scalar_lea.vmem %s2, 40
    %v1931 = vld [vmem:[%s1930] sm:$0xff]
    %v1932 = vsub.f32 %v1927, %v1687
    %1934 = vset.pattern.permute.xlu0 0
    %1935 = vperm.xlu0 %1934, %v1929
    %v1936 = vpop.permute.xlu0 %1935
    %v1938 = vmul.f32 %v1936, %v1932
    %v1939 = vadd.f32 %v1687, %v1938
    %1941 = vset.pattern.permute.xlu0 0
    %1942 = vperm.xlu0 %1941, %v1931
    %v1943 = vpop.permute.xlu0 %1942
    %v1945 = vmul.f32 %v1943, %v1927
    %v1946 = vadd.f32 %v1694, %v1945
    %v1948 = vsel %vm51, %v1939, 0
    %1950 = vmatprep.subr.mxu0 0.0
    %1951 = vmatpush1.msra.mxu0 %v417
    %1952 = vmatprep.subr.mxu0 0.0
    %1953 = vmatpush1.msra.mxu0 %v418
    %1954 = vmatprep.subr.mxu0 0.0
    %1955 = vmatpush1.msra.mxu0 %v419
    %1956 = vmatprep.subr.mxu0 0.0
    %1957 = vmatpush1.msra.mxu0 %v420
    %1958 = vmatprep.subr.mxu0 0.0
    %1959 = vmatpush1.msra.mxu0 0.0
    %1960 = vmatprep.subr.mxu0 0.0
    %1961 = vmatpush1.msra.mxu0 0.0
    %1962 = vmatprep.subr.mxu0 0.0
    %1963 = vmatpush1.msra.mxu0 0.0
    %1964 = vmatprep.subr.mxu0 0.0
    %1965 = vmatpush1.msra.mxu0 0.0
    %1966 = vmatprep.subr.mxu0 0.0
    %1967 = vmatpush1.msra.mxu0 0.0
    %1968 = vmatprep.subr.mxu0 0.0
    %1969 = vmatpush1.msra.mxu0 0.0
    %1970 = vmatprep.subr.mxu0 0.0
    %1971 = vmatpush1.msra.mxu0 0.0
    %1972 = vmatprep.subr.mxu0 0.0
    %1973 = vmatpush1.msra.mxu0 0.0
    %1974 = vmatprep.subr.mxu0 0.0
    %1975 = vmatpush1.msra.mxu0 0.0
    %1976 = vmatprep.subr.mxu0 0.0
    %1977 = vmatpush1.msra.mxu0 0.0
    %1978 = vmatprep.subr.mxu0 0.0
    %1979 = vmatpush1.msra.mxu0 0.0
    %1980 = vmatprep.subr.mxu0 0.0
    %1981 = vmatpush1.msra.mxu0 0.0
    %1982 = vmatprep.subr.mxu0 0.0
    %1983 = vmatpush1.msra.mxu0 0.0
    %1984 = vmatprep.subr.mxu0 0.0
    %1985 = vmatpush1.msra.mxu0 0.0
    %1986 = vmatprep.subr.mxu0 0.0
    %1987 = vmatpush1.msra.mxu0 0.0
    %1988 = vmatprep.subr.mxu0 0.0
    %1989 = vmatpush1.msra.mxu0 0.0
    %1990 = vmatprep.subr.mxu0 0.0
    %1991 = vmatpush1.msra.mxu0 0.0
    %1992 = vmatprep.subr.mxu0 0.0
    %1993 = vmatpush1.msra.mxu0 0.0
    %1994 = vmatprep.subr.mxu0 0.0
    %1995 = vmatpush1.msra.mxu0 0.0
    %1996 = vmatprep.subr.mxu0 0.0
    %1997 = vmatpush1.msra.mxu0 0.0
    %1998 = vmatprep.subr.mxu0 0.0
    %1999 = vmatpush1.msra.mxu0 0.0
    %2000 = vmatprep.subr.mxu0 0.0
    %2001 = vmatpush1.msra.mxu0 0.0
    %2002 = vmatprep.subr.mxu0 0.0
    %2003 = vmatpush1.msra.mxu0 0.0
    %2004 = vmatprep.subr.mxu0 0.0
    %2005 = vmatpush1.msra.mxu0 0.0
    %2006 = vmatprep.subr.mxu0 0.0
    %2007 = vmatpush1.msra.mxu0 0.0
    %2008 = vmatprep.subr.mxu0 0.0
    %2009 = vmatpush1.msra.mxu0 0.0
    %2010 = vmatprep.subr.mxu0 0.0
    %2011 = vmatpush1.msra.mxu0 0.0
    %2012 = vmatprep.subr.mxu0 0.0
    %2013 = vmatpush1.msra.mxu0 0.0
    %2014 = vmatprep.mubr.f32.mxu0 0.0
    %2015 = vmatmul.mubr.f32.gmra.mrb[0].mxu0 %v1948
    %v2016 = vpop.f32.mrb[0].mxu0
    %v2017 = vadd.f32 0.0, %v2016
    %v2018 = vpop.f32.mrb[0].mxu0
    %2019 = vdwg.mxu0
    %2020 = vmatprep.subr.mxu0 0.0
    %2021 = vmatpush1.msra.mxu0 %v422
    %2022 = vmatprep.subr.mxu0 0.0
    %2023 = vmatpush1.msra.mxu0 %v423
    %2024 = vmatprep.subr.mxu0 0.0
    %2025 = vmatpush1.msra.mxu0 %v424
    %2026 = vmatprep.subr.mxu0 0.0
    %2027 = vmatpush1.msra.mxu0 %v425
    %2028 = vmatprep.subr.mxu0 0.0
    %2029 = vmatpush1.msra.mxu0 0.0
    %2030 = vmatprep.subr.mxu0 0.0
    %2031 = vmatpush1.msra.mxu0 0.0
    %2032 = vmatprep.subr.mxu0 0.0
    %2033 = vmatpush1.msra.mxu0 0.0
    %2034 = vmatprep.subr.mxu0 0.0
    %2035 = vmatpush1.msra.mxu0 0.0
    %2036 = vmatprep.subr.mxu0 0.0
    %2037 = vmatpush1.msra.mxu0 0.0
    %2038 = vmatprep.subr.mxu0 0.0
    %2039 = vmatpush1.msra.mxu0 0.0
    %2040 = vmatprep.subr.mxu0 0.0
    %2041 = vmatpush1.msra.mxu0 0.0
    %2042 = vmatprep.subr.mxu0 0.0
    %2043 = vmatpush1.msra.mxu0 0.0
    %2044 = vmatprep.subr.mxu0 0.0
    %2045 = vmatpush1.msra.mxu0 0.0
    %2046 = vmatprep.subr.mxu0 0.0
    %2047 = vmatpush1.msra.mxu0 0.0
    %2048 = vmatprep.subr.mxu0 0.0
    %2049 = vmatpush1.msra.mxu0 0.0
    %2050 = vmatprep.subr.mxu0 0.0
    %2051 = vmatpush1.msra.mxu0 0.0
    %2052 = vmatprep.subr.mxu0 0.0
    %2053 = vmatpush1.msra.mxu0 0.0
    %2054 = vmatprep.subr.mxu0 0.0
    %2055 = vmatpush1.msra.mxu0 0.0
    %2056 = vmatprep.subr.mxu0 0.0
    %2057 = vmatpush1.msra.mxu0 0.0
    %2058 = vmatprep.subr.mxu0 0.0
    %2059 = vmatpush1.msra.mxu0 0.0
    %2060 = vmatprep.subr.mxu0 0.0
    %2061 = vmatpush1.msra.mxu0 0.0
    %2062 = vmatprep.subr.mxu0 0.0
    %2063 = vmatpush1.msra.mxu0 0.0
    %2064 = vmatprep.subr.mxu0 0.0
    %2065 = vmatpush1.msra.mxu0 0.0
    %2066 = vmatprep.subr.mxu0 0.0
    %2067 = vmatpush1.msra.mxu0 0.0
    %2068 = vmatprep.subr.mxu0 0.0
    %2069 = vmatpush1.msra.mxu0 0.0
    %2070 = vmatprep.subr.mxu0 0.0
    %2071 = vmatpush1.msra.mxu0 0.0
    %2072 = vmatprep.subr.mxu0 0.0
    %2073 = vmatpush1.msra.mxu0 0.0
    %2074 = vmatprep.subr.mxu0 0.0
    %2075 = vmatpush1.msra.mxu0 0.0
    %2076 = vmatprep.subr.mxu0 0.0
    %2077 = vmatpush1.msra.mxu0 0.0
    %2078 = vmatprep.subr.mxu0 0.0
    %2079 = vmatpush1.msra.mxu0 0.0
    %2080 = vmatprep.subr.mxu0 0.0
    %2081 = vmatpush1.msra.mxu0 0.0
    %2082 = vmatprep.subr.mxu0 0.0
    %2083 = vmatpush1.msra.mxu0 0.0
    %2084 = vmatprep.mubr.f32.mxu0 0.0
    %2085 = vmatmul.mubr.f32.gmra.mrb[0].mxu0 %v1948
    %v2086 = vpop.f32.mrb[0].mxu0
    %v2087 = vadd.f32 0.0, %v2086
    %v2088 = vpop.f32.mrb[0].mxu0
    %2089 = vdwg.mxu0
    %2090 = vmatprep.subr.mxu0 0.0
    %2091 = vmatpush1.msra.mxu0 %v427
    %2092 = vmatprep.subr.mxu0 0.0
    %2093 = vmatpush1.msra.mxu0 %v428
    %2094 = vmatprep.subr.mxu0 0.0
    %2095 = vmatpush1.msra.mxu0 %v429
    %2096 = vmatprep.subr.mxu0 0.0
    %2097 = vmatpush1.msra.mxu0 %v430
    %2098 = vmatprep.subr.mxu0 0.0
    %2099 = vmatpush1.msra.mxu0 0.0
    %2100 = vmatprep.subr.mxu0 0.0
    %2101 = vmatpush1.msra.mxu0 0.0
    %2102 = vmatprep.subr.mxu0 0.0
    %2103 = vmatpush1.msra.mxu0 0.0
    %2104 = vmatprep.subr.mxu0 0.0
    %2105 = vmatpush1.msra.mxu0 0.0
    %2106 = vmatprep.subr.mxu0 0.0
    %2107 = vmatpush1.msra.mxu0 0.0
    %2108 = vmatprep.subr.mxu0 0.0
    %2109 = vmatpush1.msra.mxu0 0.0
    %2110 = vmatprep.subr.mxu0 0.0
    %2111 = vmatpush1.msra.mxu0 0.0
    %2112 = vmatprep.subr.mxu0 0.0
    %2113 = vmatpush1.msra.mxu0 0.0
    %2114 = vmatprep.subr.mxu0 0.0
    %2115 = vmatpush1.msra.mxu0 0.0
    %2116 = vmatprep.subr.mxu0 0.0
    %2117 = vmatpush1.msra.mxu0 0.0
    %2118 = vmatprep.subr.mxu0 0.0
    %2119 = vmatpush1.msra.mxu0 0.0
    %2120 = vmatprep.subr.mxu0 0.0
    %2121 = vmatpush1.msra.mxu0 0.0
    %2122 = vmatprep.subr.mxu0 0.0
    %2123 = vmatpush1.msra.mxu0 0.0
    %2124 = vmatprep.subr.mxu0 0.0
    %2125 = vmatpush1.msra.mxu0 0.0
    %2126 = vmatprep.subr.mxu0 0.0
    %2127 = vmatpush1.msra.mxu0 0.0
    %2128 = vmatprep.subr.mxu0 0.0
    %2129 = vmatpush1.msra.mxu0 0.0
    %2130 = vmatprep.subr.mxu0 0.0
    %2131 = vmatpush1.msra.mxu0 0.0
    %2132 = vmatprep.subr.mxu0 0.0
    %2133 = vmatpush1.msra.mxu0 0.0
    %2134 = vmatprep.subr.mxu0 0.0
    %2135 = vmatpush1.msra.mxu0 0.0
    %2136 = vmatprep.subr.mxu0 0.0
    %2137 = vmatpush1.msra.mxu0 0.0
    %2138 = vmatprep.subr.mxu0 0.0
    %2139 = vmatpush1.msra.mxu0 0.0
    %2140 = vmatprep.subr.mxu0 0.0
    %2141 = vmatpush1.msra.mxu0 0.0
    %2142 = vmatprep.subr.mxu0 0.0
    %2143 = vmatpush1.msra.mxu0 0.0
    %2144 = vmatprep.subr.mxu0 0.0
    %2145 = vmatpush1.msra.mxu0 0.0
    %2146 = vmatprep.subr.mxu0 0.0
    %2147 = vmatpush1.msra.mxu0 0.0
    %2148 = vmatprep.subr.mxu0 0.0
    %2149 = vmatpush1.msra.mxu0 0.0
    %2150 = vmatprep.subr.mxu0 0.0
    %2151 = vmatpush1.msra.mxu0 0.0
    %2152 = vmatprep.subr.mxu0 0.0
    %2153 = vmatpush1.msra.mxu0 0.0
    %2154 = vmatprep.mubr.f32.mxu0 0.0
    %2155 = vmatmul.mubr.f32.gmra.mrb[0].mxu0 %v1948
    %v2156 = vpop.f32.mrb[0].mxu0
    %v2157 = vadd.f32 %v579, %v2156
    %v2158 = vpop.f32.mrb[0].mxu0
    %2159 = vdwg.mxu0
    %v2160 = vadd.f32 %v173, %v2017
    %v2161 = vsub.f32 0.0, %v2160
    %v2162 = vmul.f32 %v2161, 1.442695
    %v2163 = vpow.pop %v2162
    %v2164 = vadd.f32 %v2163, 1.0
    %v2165 = vrcp.pop %v2164
    %v2166 = vmul.f32 1.0, %v2165
    %v2167 = vadd.f32 %v291, %v2087
    %v2168 = vsub.f32 0.0, %v2167
    %v2169 = vmul.f32 %v2168, 1.442695
    %v2170 = vpow.pop %v2169
    %v2171 = vadd.f32 %v2170, 1.0
    %v2172 = vrcp.pop %v2171
    %v2173 = vmul.f32 1.0, %v2172
    %v2174 = vmul.f32 %v2166, %v2157
    %v2175 = vadd.f32 %v409, %v2174
    %v2176 = vtanh.pop %v2175
    %v2177 = vsub.f32 %v1939, %v2176
    %v2178 = vmul.f32 %v2173, %v2177
    %v2179 = vadd.f32 %v2176, %v2178
    %s2180 = scalar_lea.vmem %s1, 48
    %v2181 = vld [vmem:[%s2180] sm:$0xff]
    %s2182 = scalar_lea.vmem %s2, 48
    %v2183 = vld [vmem:[%s2182] sm:$0xff]
    %v2184 = vsub.f32 %v2179, %v1939
    %2186 = vset.pattern.permute.xlu0 0
    %2187 = vperm.xlu0 %2186, %v2181
    %v2188 = vpop.permute.xlu0 %2187
    %v2190 = vmul.f32 %v2188, %v2184
    %v2191 = vadd.f32 %v1939, %v2190
    %2193 = vset.pattern.permute.xlu0 0
    %2194 = vperm.xlu0 %2193, %v2183
    %v2195 = vpop.permute.xlu0 %2194
    %v2197 = vmul.f32 %v2195, %v2179
    %v2198 = vadd.f32 %v1946, %v2197
    %v2200 = vsel %vm51, %v2191, 0
    %2202 = vmatprep.subr.mxu0 0.0
    %2203 = vmatpush1.msra.mxu0 %v417
    %2204 = vmatprep.subr.mxu0 0.0
    %2205 = vmatpush1.msra.mxu0 %v418
    %2206 = vmatprep.subr.mxu0 0.0
    %2207 = vmatpush1.msra.mxu0 %v419
    %2208 = vmatprep.subr.mxu0 0.0
    %2209 = vmatpush1.msra.mxu0 %v420
    %2210 = vmatprep.subr.mxu0 0.0
    %2211 = vmatpush1.msra.mxu0 0.0
    %2212 = vmatprep.subr.mxu0 0.0
    %2213 = vmatpush1.msra.mxu0 0.0
    %2214 = vmatprep.subr.mxu0 0.0
    %2215 = vmatpush1.msra.mxu0 0.0
    %2216 = vmatprep.subr.mxu0 0.0
    %2217 = vmatpush1.msra.mxu0 0.0
    %2218 = vmatprep.subr.mxu0 0.0
    %2219 = vmatpush1.msra.mxu0 0.0
    %2220 = vmatprep.subr.mxu0 0.0
    %2221 = vmatpush1.msra.mxu0 0.0
    %2222 = vmatprep.subr.mxu0 0.0
    %2223 = vmatpush1.msra.mxu0 0.0
    %2224 = vmatprep.subr.mxu0 0.0
    %2225 = vmatpush1.msra.mxu0 0.0
    %2226 = vmatprep.subr.mxu0 0.0
    %2227 = vmatpush1.msra.mxu0 0.0
    %2228 = vmatprep.subr.mxu0 0.0
    %2229 = vmatpush1.msra.mxu0 0.0
    %2230 = vmatprep.subr.mxu0 0.0
    %2231 = vmatpush1.msra.mxu0 0.0
    %2232 = vmatprep.subr.mxu0 0.0
    %2233 = vmatpush1.msra.mxu0 0.0
    %2234 = vmatprep.subr.mxu0 0.0
    %2235 = vmatpush1.msra.mxu0 0.0
    %2236 = vmatprep.subr.mxu0 0.0
    %2237 = vmatpush1.msra.mxu0 0.0
    %2238 = vmatprep.subr.mxu0 0.0
    %2239 = vmatpush1.msra.mxu0 0.0
    %2240 = vmatprep.subr.mxu0 0.0
    %2241 = vmatpush1.msra.mxu0 0.0
    %2242 = vmatprep.subr.mxu0 0.0
    %2243 = vmatpush1.msra.mxu0 0.0
    %2244 = vmatprep.subr.mxu0 0.0
    %2245 = vmatpush1.msra.mxu0 0.0
    %2246 = vmatprep.subr.mxu0 0.0
    %2247 = vmatpush1.msra.mxu0 0.0
    %2248 = vmatprep.subr.mxu0 0.0
    %2249 = vmatpush1.msra.mxu0 0.0
    %2250 = vmatprep.subr.mxu0 0.0
    %2251 = vmatpush1.msra.mxu0 0.0
    %2252 = vmatprep.subr.mxu0 0.0
    %2253 = vmatpush1.msra.mxu0 0.0
    %2254 = vmatprep.subr.mxu0 0.0
    %2255 = vmatpush1.msra.mxu0 0.0
    %2256 = vmatprep.subr.mxu0 0.0
    %2257 = vmatpush1.msra.mxu0 0.0
    %2258 = vmatprep.subr.mxu0 0.0
    %2259 = vmatpush1.msra.mxu0 0.0
    %2260 = vmatprep.subr.mxu0 0.0
    %2261 = vmatpush1.msra.mxu0 0.0
    %2262 = vmatprep.subr.mxu0 0.0
    %2263 = vmatpush1.msra.mxu0 0.0
    %2264 = vmatprep.subr.mxu0 0.0
    %2265 = vmatpush1.msra.mxu0 0.0
    %2266 = vmatprep.mubr.f32.mxu0 0.0
    %2267 = vmatmul.mubr.f32.gmra.mrb[0].mxu0 %v2200
    %v2268 = vpop.f32.mrb[0].mxu0
    %v2269 = vadd.f32 0.0, %v2268
    %v2270 = vpop.f32.mrb[0].mxu0
    %2271 = vdwg.mxu0
    %2272 = vmatprep.subr.mxu0 0.0
    %2273 = vmatpush1.msra.mxu0 %v422
    %2274 = vmatprep.subr.mxu0 0.0
    %2275 = vmatpush1.msra.mxu0 %v423
    %2276 = vmatprep.subr.mxu0 0.0
    %2277 = vmatpush1.msra.mxu0 %v424
    %2278 = vmatprep.subr.mxu0 0.0
    %2279 = vmatpush1.msra.mxu0 %v425
    %2280 = vmatprep.subr.mxu0 0.0
    %2281 = vmatpush1.msra.mxu0 0.0
    %2282 = vmatprep.subr.mxu0 0.0
    %2283 = vmatpush1.msra.mxu0 0.0
    %2284 = vmatprep.subr.mxu0 0.0
    %2285 = vmatpush1.msra.mxu0 0.0
    %2286 = vmatprep.subr.mxu0 0.0
    %2287 = vmatpush1.msra.mxu0 0.0
    %2288 = vmatprep.subr.mxu0 0.0
    %2289 = vmatpush1.msra.mxu0 0.0
    %2290 = vmatprep.subr.mxu0 0.0
    %2291 = vmatpush1.msra.mxu0 0.0
    %2292 = vmatprep.subr.mxu0 0.0
    %2293 = vmatpush1.msra.mxu0 0.0
    %2294 = vmatprep.subr.mxu0 0.0
    %2295 = vmatpush1.msra.mxu0 0.0
    %2296 = vmatprep.subr.mxu0 0.0
    %2297 = vmatpush1.msra.mxu0 0.0
    %2298 = vmatprep.subr.mxu0 0.0
    %2299 = vmatpush1.msra.mxu0 0.0
    %2300 = vmatprep.subr.mxu0 0.0
    %2301 = vmatpush1.msra.mxu0 0.0
    %2302 = vmatprep.subr.mxu0 0.0
    %2303 = vmatpush1.msra.mxu0 0.0
    %2304 = vmatprep.subr.mxu0 0.0
    %2305 = vmatpush1.msra.mxu0 0.0
    %2306 = vmatprep.subr.mxu0 0.0
    %2307 = vmatpush1.msra.mxu0 0.0
    %2308 = vmatprep.subr.mxu0 0.0
    %2309 = vmatpush1.msra.mxu0 0.0
    %2310 = vmatprep.subr.mxu0 0.0
    %2311 = vmatpush1.msra.mxu0 0.0
    %2312 = vmatprep.subr.mxu0 0.0
    %2313 = vmatpush1.msra.mxu0 0.0
    %2314 = vmatprep.subr.mxu0 0.0
    %2315 = vmatpush1.msra.mxu0 0.0
    %2316 = vmatprep.subr.mxu0 0.0
    %2317 = vmatpush1.msra.mxu0 0.0
    %2318 = vmatprep.subr.mxu0 0.0
    %2319 = vmatpush1.msra.mxu0 0.0
    %2320 = vmatprep.subr.mxu0 0.0
    %2321 = vmatpush1.msra.mxu0 0.0
    %2322 = vmatprep.subr.mxu0 0.0
    %2323 = vmatpush1.msra.mxu0 0.0
    %2324 = vmatprep.subr.mxu0 0.0
    %2325 = vmatpush1.msra.mxu0 0.0
    %2326 = vmatprep.subr.mxu0 0.0
    %2327 = vmatpush1.msra.mxu0 0.0
    %2328 = vmatprep.subr.mxu0 0.0
    %2329 = vmatpush1.msra.mxu0 0.0
    %2330 = vmatprep.subr.mxu0 0.0
    %2331 = vmatpush1.msra.mxu0 0.0
    %2332 = vmatprep.subr.mxu0 0.0
    %2333 = vmatpush1.msra.mxu0 0.0
    %2334 = vmatprep.subr.mxu0 0.0
    %2335 = vmatpush1.msra.mxu0 0.0
    %2336 = vmatprep.mubr.f32.mxu0 0.0
    %2337 = vmatmul.mubr.f32.gmra.mrb[0].mxu0 %v2200
    %v2338 = vpop.f32.mrb[0].mxu0
    %v2339 = vadd.f32 0.0, %v2338
    %v2340 = vpop.f32.mrb[0].mxu0
    %2341 = vdwg.mxu0
    %2342 = vmatprep.subr.mxu0 0.0
    %2343 = vmatpush1.msra.mxu0 %v427
    %2344 = vmatprep.subr.mxu0 0.0
    %2345 = vmatpush1.msra.mxu0 %v428
    %2346 = vmatprep.subr.mxu0 0.0
    %2347 = vmatpush1.msra.mxu0 %v429
    %2348 = vmatprep.subr.mxu0 0.0
    %2349 = vmatpush1.msra.mxu0 %v430
    %2350 = vmatprep.subr.mxu0 0.0
    %2351 = vmatpush1.msra.mxu0 0.0
    %2352 = vmatprep.subr.mxu0 0.0
    %2353 = vmatpush1.msra.mxu0 0.0
    %2354 = vmatprep.subr.mxu0 0.0
    %2355 = vmatpush1.msra.mxu0 0.0
    %2356 = vmatprep.subr.mxu0 0.0
    %2357 = vmatpush1.msra.mxu0 0.0
    %2358 = vmatprep.subr.mxu0 0.0
    %2359 = vmatpush1.msra.mxu0 0.0
    %2360 = vmatprep.subr.mxu0 0.0
    %2361 = vmatpush1.msra.mxu0 0.0
    %2362 = vmatprep.subr.mxu0 0.0
    %2363 = vmatpush1.msra.mxu0 0.0
    %2364 = vmatprep.subr.mxu0 0.0
    %2365 = vmatpush1.msra.mxu0 0.0
    %2366 = vmatprep.subr.mxu0 0.0
    %2367 = vmatpush1.msra.mxu0 0.0
    %2368 = vmatprep.subr.mxu0 0.0
    %2369 = vmatpush1.msra.mxu0 0.0
    %2370 = vmatprep.subr.mxu0 0.0
    %2371 = vmatpush1.msra.mxu0 0.0
    %2372 = vmatprep.subr.mxu0 0.0
    %2373 = vmatpush1.msra.mxu0 0.0
    %2374 = vmatprep.subr.mxu0 0.0
    %2375 = vmatpush1.msra.mxu0 0.0
    %2376 = vmatprep.subr.mxu0 0.0
    %2377 = vmatpush1.msra.mxu0 0.0
    %2378 = vmatprep.subr.mxu0 0.0
    %2379 = vmatpush1.msra.mxu0 0.0
    %2380 = vmatprep.subr.mxu0 0.0
    %2381 = vmatpush1.msra.mxu0 0.0
    %2382 = vmatprep.subr.mxu0 0.0
    %2383 = vmatpush1.msra.mxu0 0.0
    %2384 = vmatprep.subr.mxu0 0.0
    %2385 = vmatpush1.msra.mxu0 0.0
    %2386 = vmatprep.subr.mxu0 0.0
    %2387 = vmatpush1.msra.mxu0 0.0
    %2388 = vmatprep.subr.mxu0 0.0
    %2389 = vmatpush1.msra.mxu0 0.0
    %2390 = vmatprep.subr.mxu0 0.0
    %2391 = vmatpush1.msra.mxu0 0.0
    %2392 = vmatprep.subr.mxu0 0.0
    %2393 = vmatpush1.msra.mxu0 0.0
    %2394 = vmatprep.subr.mxu0 0.0
    %2395 = vmatpush1.msra.mxu0 0.0
    %2396 = vmatprep.subr.mxu0 0.0
    %2397 = vmatpush1.msra.mxu0 0.0
    %2398 = vmatprep.subr.mxu0 0.0
    %2399 = vmatpush1.msra.mxu0 0.0
    %2400 = vmatprep.subr.mxu0 0.0
    %2401 = vmatpush1.msra.mxu0 0.0
    %2402 = vmatprep.subr.mxu0 0.0
    %2403 = vmatpush1.msra.mxu0 0.0
    %2404 = vmatprep.subr.mxu0 0.0
    %2405 = vmatpush1.msra.mxu0 0.0
    %2406 = vmatprep.mubr.f32.mxu0 0.0
    %2407 = vmatmul.mubr.f32.gmra.mrb[0].mxu0 %v2200
    %v2408 = vpop.f32.mrb[0].mxu0
    %v2409 = vadd.f32 %v579, %v2408
    %v2410 = vpop.f32.mrb[0].mxu0
    %2411 = vdwg.mxu0
    %v2412 = vadd.f32 %v178, %v2269
    %v2413 = vsub.f32 0.0, %v2412
    %v2414 = vmul.f32 %v2413, 1.442695
    %v2415 = vpow.pop %v2414
    %v2416 = vadd.f32 %v2415, 1.0
    %v2417 = vrcp.pop %v2416
    %v2418 = vmul.f32 1.0, %v2417
    %v2419 = vadd.f32 %v296, %v2339
    %v2420 = vsub.f32 0.0, %v2419
    %v2421 = vmul.f32 %v2420, 1.442695
    %v2422 = vpow.pop %v2421
    %v2423 = vadd.f32 %v2422, 1.0
    %v2424 = vrcp.pop %v2423
    %v2425 = vmul.f32 1.0, %v2424
    %v2426 = vmul.f32 %v2418, %v2409
    %v2427 = vadd.f32 %v414, %v2426
    %v2428 = vtanh.pop %v2427
    %v2429 = vsub.f32 %v2191, %v2428
    %v2430 = vmul.f32 %v2425, %v2429
    %v2431 = vadd.f32 %v2428, %v2430
    %s2432 = scalar_lea.vmem %s2, 56
    %v2433 = vld [vmem:[%s2432] sm:$0xff]
    %2435 = vset.pattern.permute.xlu0 0
    %2436 = vperm.xlu0 %2435, %v2433
    %v2437 = vpop.permute.xlu0 %2436
    %v2439 = vmul.f32 %v2437, %v2431
    %v2440 = vadd.f32 %v2198, %v2439
    %v2441 = vld [vmem:[#allocation2] sm:$0x1]
    %v2443 = vlaneseq
    %v2444 = vshrl.u32 %v2443, 7
    %v2445 = vsub.s32 0, %v2444
    %v2446 = vrot.slane %v2441, %v2445
    %2447 = vset.pattern.permute.xlu0 0
    %2448 = vperm.xlu0 %2447, %v2446
    %v2449 = vpop.permute.xlu0 %2448
    %v2451 = vadd.f32 %v2440, %v2449
    %v2452 = vtanh.pop %v2451
    %2453 = vst.msk [vmem:[#allocation3] sm:$0xff] %vm51, %v2452
    // Predicated region
    $region34: #{tpu_custom_call.1} parent=1 // pred_check
      _
    $region35: #{tpu_custom_call.1} parent=1 // pred_check_branch
      %2455 = sbr.rel (0) target = $region37
    $region36: #{tpu_custom_call.1} parent=1 // pred_region
      %s2457 = ssub.s32 128, 128
      %2458 = vsyncadd [#allocation4], %s2457
      %s2460 = sshll.u32 [#allocation3], 4
      %s2461 = int_to_ptr.vmem [resolvable:$true] %s2460
      %2463 = dma.vmem_to_hbm [thread:$0]  %s2461, 128, %s8, [#allocation4]
    $region37: #{tpu_custom_call.1} parent=1 // pred_fallthru
      _
    // Predicated region
    $region38: #{tpu_custom_call.1} parent=1 // pred_check
      _
    $region39: #{tpu_custom_call.1} parent=1 // pred_check_branch
      %2465 = sbr.rel (0) target = $region41
    $region40: #{tpu_custom_call.1} parent=1 // pred_region
      %2466 = dma.done [#allocation4], 128
    $region41: #{tpu_custom_call.1} parent=1 // pred_fallthru
      _
    %2467 = vsyncpa [#allocation4], 1

</llo_original>
